<compile_context>
chip_gen: v6e
topology: v6e:2x2x1
jax: 0.10.0
libtpu: 0.0.40
codegen_flags: <defaults>
</compile_context>

<pallas_src>
import jax
import jax.numpy as jnp
from jax import lax
from jax.experimental import pallas as pl
from jax.experimental.pallas import tpu as pltpu


# ----------------------------- helpers ---------------------------------------

def _pick_tile(n, target=512):
    """Largest tile <= target that divides n and is a multiple of 128, else n."""
    if n <= target:
        return n
    t = (target // 128) * 128
    while t >= 128:
        if n % t == 0:
            return t
        t -= 128
    return n


def _vmem_limit(nbytes):
    # explicit scoped-VMEM limit with headroom; clamp to [32 MiB, 64 MiB] so it
    # stays legal on v7x (64 MiB physical) while exceeding v5e/v6e defaults.
    return int(min(64 * 1024 * 1024, max(32 * 1024 * 1024, 2 * nbytes)))


# ----------------------------- kernels ---------------------------------------

def _proj_kernel(x_ref, wt_ref, bt_ref, wf_ref, bf_ref, wg_ref, bg_ref,
                 t_ref, f_ref, g_ref):
    # x_ref: (1, C, tile_n); w*: (C2, C); b*: (C2, 1); outputs: (1, C2, tile_n)
    x = x_ref[0].astype(jnp.bfloat16)                       # (C, tile_n)

    def conv1x1(w_ref, b_ref):
        return jnp.dot(w_ref[...].astype(jnp.bfloat16), x,
                       preferred_element_type=jnp.float32) + b_ref[...]

    t_ref[0] = conv1x1(wt_ref, bt_ref)
    f_ref[0] = conv1x1(wf_ref, bf_ref)
    g_ref[0] = conv1x1(wg_ref, bg_ref)


def _attn_kernel(x1_ref, f_ref, x3_ref, xcn_ref, wo_ref, bo_ref, o_ref, y_acc):
    # x1: (1, N, C2)   f: (1, C2, tile_m)   x3: (1, tile_m, C2)
    # xcn: (1, C, N)   wo: (C, C2)          bo: (C, 1)
    # o:  (1, C, N) channel-major (lane-dense)   y_acc: (N, C2) f32 scratch
    m = pl.program_id(1)

    @pl.when(m == 0)
    def _init():
        y_acc[...] = jnp.zeros_like(y_acc)

    x1 = x1_ref[0].astype(jnp.bfloat16)                     # (N, C2)
    fb = f_ref[0].astype(jnp.bfloat16)                      # (C2, tile_m)

    # scores for this block of key columns (f32 MXU accumulation)
    s = jnp.dot(x1, fb, preferred_element_type=jnp.float32)  # (N, tile_m)

    # softmax over axis 0 (== PyTorch F.softmax(dim=1) on (B, N, N)); every
    # column is complete inside an m-block, so this is exact. f32 math (v5e-safe).
    s = s - jnp.max(s, axis=0, keepdims=True)
    e = jnp.exp(s)
    a = e * pl.reciprocal(jnp.sum(e, axis=0, keepdims=True), approx=True)

    # y += softmax(s) @ x3[m_block]   (contraction over the key axis m)
    y_acc[...] += jnp.dot(a.astype(jnp.bfloat16),
                          x3_ref[0].astype(jnp.bfloat16),
                          preferred_element_type=jnp.float32)  # (N, C2)

    @pl.when(m == pl.num_programs(1) - 1)
    def _finalize():
        y = y_acc[...]                                       # (N, C2)
        w = wo_ref[...]                                      # (C, C2)
        # z = Wo @ y^T -> (C, N): channel-major output, no transposes needed
        z = lax.dot_general(w, y, (((1,), (1,)), ((), ())),
                            preferred_element_type=jnp.float32)
        o_ref[0] = xcn_ref[0] + z + bo_ref[...]              # residual + bias


# ----------------------------- wrapper ----------------------------------------

def non_local_block(x, params, *, key_tile=512, proj_tile=512):
    wt, bt, wf, bf, wg, bg, wo, bo = params
    B, C, H, W = x.shape
    C2 = C // 2
    N = H * W

    x_cn = x.reshape(B, C, N)                                # contiguous reshape (bitcast)

    tile_n = _pick_tile(N, proj_tile)
    tile_m = _pick_tile(N, key_tile)

    bt2, bf2, bg2, bo2 = bt[:, None], bf[:, None], bg[:, None], bo[:, None]

    # --- projection: three fused-as-one-pass 1x1 convs, tiled over N -----------
    proj_vmem = 4 * (2 * C * tile_n + 6 * 3 * C2 * tile_n + 6 * (C2 * C + C2))
    proj_cost = pl.CostEstimate(
        flops=int(2 * B * N * C * 3 * C2),
        transcendentals=0,
        bytes_accessed=int(4 * (B * C * N + 3 * B * C2 * N + 3 * (C2 * C + C2))),
    )

    t, f, g = pl.pallas_call(
        _proj_kernel,
        out_shape=(
            jax.ShapeDtypeStruct((B, C2, N), jnp.float32),
            jax.ShapeDtypeStruct((B, C2, N), jnp.float32),
            jax.ShapeDtypeStruct((B, C2, N), jnp.float32),
        ),
        grid=(B, N // tile_n),
        in_specs=[
            pl.BlockSpec((1, C, tile_n), lambda b, n: (b, 0, n)),
            pl.BlockSpec((C2, C), lambda b, n: (0, 0)),
            pl.BlockSpec((C2, 1), lambda b, n: (0, 0)),
            pl.BlockSpec((C2, C), lambda b, n: (0, 0)),
            pl.BlockSpec((C2, 1), lambda b, n: (0, 0)),
            pl.BlockSpec((C2, C), lambda b, n: (0, 0)),
            pl.BlockSpec((C2, 1), lambda b, n: (0, 0)),
        ],
        out_specs=[
            pl.BlockSpec((1, C2, tile_n), lambda b, n: (b, 0, n)),
            pl.BlockSpec((1, C2, tile_n), lambda b, n: (b, 0, n)),
            pl.BlockSpec((1, C2, tile_n), lambda b, n: (b, 0, n)),
        ],
        compiler_params=pltpu.CompilerParams(
            dimension_semantics=("parallel", "parallel"),
            vmem_limit_bytes=_vmem_limit(proj_vmem)),
        cost_estimate=proj_cost,
    )(x_cn, wt, bt2, wf, bf2, wg, bg2)

    # PyTorch `.view(B, N, C2)` of contiguous (B, C2, N): raw row-major
    # reinterpretation (NOT a transpose) -> bitcast reshape, no HBM copy.
    x1 = t.reshape(B, N, C2)
    x3 = g.reshape(B, N, C2)

    # --- attention: tiled over key/column axis m with VMEM accumulator ---------
    attn_vmem = 4 * (2 * N * C2 + 4 * tile_m * C2 + 4 * C * N
                     + C * C2 + C + N * C2 + 4 * N * tile_m)
    attn_cost = pl.CostEstimate(
        flops=int(B * (4 * N * N * C2 + 2 * N * C2 * C)),
        transcendentals=int(B * N * N),
        bytes_accessed=int(4 * (B * (3 * N * C2 + 2 * C * N) + C * C2 + C)),
    )

    out_cn = pl.pallas_call(
        _attn_kernel,
        out_shape=jax.ShapeDtypeStruct((B, C, N), jnp.float32),
        grid=(B, N // tile_m),
        in_specs=[
            pl.BlockSpec((1, N, C2), lambda b, m: (b, 0, 0)),
            pl.BlockSpec((1, C2, tile_m), lambda b, m: (b, 0, m)),
            pl.BlockSpec((1, tile_m, C2), lambda b, m: (b, m, 0)),
            pl.BlockSpec((1, C, N), lambda b, m: (b, 0, 0)),
            pl.BlockSpec((C, C2), lambda b, m: (0, 0)),
            pl.BlockSpec((C, 1), lambda b, m: (0, 0)),
        ],
        out_specs=pl.BlockSpec((1, C, N), lambda b, m: (b, 0, 0)),
        scratch_shapes=[pltpu.VMEM((N, C2), jnp.float32)],
        compiler_params=pltpu.CompilerParams(
            dimension_semantics=("parallel", "arbitrary"),
            vmem_limit_bytes=_vmem_limit(attn_vmem)),
        cost_estimate=attn_cost,
    )(x1, f, x3, x_cn, wo, bo2)

    return out_cn.reshape(B, C, H, W)


# ------------------------ pure-JAX reference ----------------------------------

def non_local_block_ref(x, params):
    wt, bt, wf, bf, wg, bg, wo, bo = params
    B, C, H, W = x.shape
    C2 = C // 2
    N = H * W
    conv1x1 = lambda inp, w, b: jnp.einsum("oc,bchw->bohw", w, inp) + b[None, :, None, None]
    t = conv1x1(x, wt, bt).reshape(B, C2, N)
    f = conv1x1(x, wf, bf).reshape(B, C2, N)
    g = conv1x1(x, wg, bg).reshape(B, C2, N)
    x1 = t.reshape(B, N, C2)                  # torch .view semantics
    x3 = g.reshape(B, N, C2)
    s = jnp.einsum("bnc,bcm->bnm", x1, f)
    a = jax.nn.softmax(s, axis=1)
    y = jnp.einsum("bnm,bmc->bnc", a, x3)
    y_t = jnp.transpose(y, (0, 2, 1)).reshape(B, C2, H, W)
    out = jnp.einsum("oc,bchw->bohw", wo, y_t) + bo[None, :, None, None]
    return x + out


# ------------------------------- main ------------------------------------------

if __name__ == "__main__":
    B, C, H, W = 2, 4, 16, 16
    C2 = C // 2

    key = jax.random.PRNGKey(0)
    keys = jax.random.split(key, 9)
    x = jax.random.normal(keys[0], (B, C, H, W), dtype=jnp.float32)

    # Deterministic synthetic parameters (1x1 conv kernels stored as (out_ch, in_ch)).
    wt = 0.2 * jax.random.normal(keys[1], (C2, C), dtype=jnp.float32)
    bt = 0.1 * jax.random.normal(keys[2], (C2,), dtype=jnp.float32)
    wf = 0.2 * jax.random.normal(keys[3], (C2, C), dtype=jnp.float32)
    bf = 0.1 * jax.random.normal(keys[4], (C2,), dtype=jnp.float32)
    wg = 0.2 * jax.random.normal(keys[5], (C2, C), dtype=jnp.float32)
    bg = 0.1 * jax.random.normal(keys[6], (C2,), dtype=jnp.float32)
    wo = 0.2 * jax.random.normal(keys[7], (C, C2), dtype=jnp.float32)
    bo = 0.1 * jax.random.normal(keys[8], (C,), dtype=jnp.float32)
    params = (wt, bt, wf, bf, wg, bg, wo, bo)

    out = jax.jit(non_local_block)(x, params)
    out = jax.block_until_ready(out)

    ref = non_local_block_ref(x, params)
    assert out.shape == (B, C, H, W) and out.dtype == jnp.float32
    assert jnp.allclose(out, ref, atol=1e-2, rtol=1e-2), (
        f"max abs err {jnp.max(jnp.abs(out - ref))}")

    print("KERNEL_OK")
</pallas_src>

<mosaic_0001>
module attributes {stable_mosaic.version = 11 : i64} {
  func.func @_proj_kernel(%arg0: i32, %arg1: i32, %arg2: memref<1x4x256xf32, #tpu.memory_space<vmem>>, %arg3: memref<2x4xf32, #tpu.memory_space<vmem>>, %arg4: memref<2x1xf32, #tpu.memory_space<vmem>>, %arg5: memref<2x4xf32, #tpu.memory_space<vmem>>, %arg6: memref<2x1xf32, #tpu.memory_space<vmem>>, %arg7: memref<2x4xf32, #tpu.memory_space<vmem>>, %arg8: memref<2x1xf32, #tpu.memory_space<vmem>>, %arg9: memref<1x2x256xf32, #tpu.memory_space<vmem>>, %arg10: memref<1x2x256xf32, #tpu.memory_space<vmem>>, %arg11: memref<1x2x256xf32, #tpu.memory_space<vmem>>) attributes {dimension_semantics = [#tpu.dimension_semantics<parallel>, #tpu.dimension_semantics<parallel>], iteration_bounds = array<i64: 2, 1>, scalar_prefetch = 0 : i64, scratch_operands = 0 : i64, tpu.core_type = #tpu.core_type<tc>, window_params = [{transform_indices = @transform_0, window_bounds = array<i64: 1, 4, 256>}, {pipeline_mode = #tpu.pipeline_mode<synchronous>, transform_indices = @transform_1, window_bounds = array<i64: 2, 4>}, {pipeline_mode = #tpu.pipeline_mode<synchronous>, transform_indices = @transform_2, window_bounds = array<i64: 2, 1>}, {pipeline_mode = #tpu.pipeline_mode<synchronous>, transform_indices = @transform_3, window_bounds = array<i64: 2, 4>}, {pipeline_mode = #tpu.pipeline_mode<synchronous>, transform_indices = @transform_4, window_bounds = array<i64: 2, 1>}, {pipeline_mode = #tpu.pipeline_mode<synchronous>, transform_indices = @transform_5, window_bounds = array<i64: 2, 4>}, {pipeline_mode = #tpu.pipeline_mode<synchronous>, transform_indices = @transform_6, window_bounds = array<i64: 2, 1>}, {transform_indices = @transform_7, window_bounds = array<i64: 1, 2, 256>}, {transform_indices = @transform_8, window_bounds = array<i64: 1, 2, 256>}, {transform_indices = @transform_9, window_bounds = array<i64: 1, 2, 256>}]} {
    %c0 = arith.constant 0 : index
    %c0_0 = arith.constant 0 : index
    %c0_1 = arith.constant 0 : index
    %0 = vector.load %arg2[%c0, %c0_0, %c0_1] : memref<1x4x256xf32, #tpu.memory_space<vmem>>, vector<1x4x256xf32>
    %1 = vector.shape_cast %0 : vector<1x4x256xf32> to vector<4x256xf32>
    %2 = arith.truncf %1 : vector<4x256xf32> to vector<4x256xbf16>
    %c0_2 = arith.constant 0 : index
    %c0_3 = arith.constant 0 : index
    %3 = vector.load %arg3[%c0_2, %c0_3] : memref<2x4xf32, #tpu.memory_space<vmem>>, vector<2x4xf32>
    %4 = arith.truncf %3 : vector<2x4xf32> to vector<2x4xbf16>
    %cst = arith.constant dense<0.000000e+00> : vector<2x256xf32>
    %5 = tpu.matmul %4, %2, %cst {dimension_numbers = #tpu.dot_dimension_numbers<[1], [0], [0], [1], [0, 0, 1, 1], [], []>} : vector<2x4xbf16>, vector<4x256xbf16>, vector<2x256xf32> -> vector<2x256xf32>
    %c0_4 = arith.constant 0 : index
    %c0_5 = arith.constant 0 : index
    %6 = vector.load %arg4[%c0_4, %c0_5] : memref<2x1xf32, #tpu.memory_space<vmem>>, vector<2x1xf32>
    %7 = vector.broadcast %6 : vector<2x1xf32> to vector<2x256xf32>
    %8 = arith.addf %5, %7 : vector<2x256xf32>
    %c0_6 = arith.constant 0 : index
    %c0_7 = arith.constant 0 : index
    %c0_8 = arith.constant 0 : index
    %9 = vector.load %arg9[%c0_6, %c0_7, %c0_8] : memref<1x2x256xf32, #tpu.memory_space<vmem>>, vector<1x2x256xf32>
    %10 = vector.shape_cast %9 : vector<1x2x256xf32> to vector<2x256xf32>
    %11 = vector.shape_cast %8 : vector<2x256xf32> to vector<1x2x256xf32>
    tpu.vector_store %arg9[%c0_6, %c0_7, %c0_8], %11 {strides = array<i32>} : memref<1x2x256xf32, #tpu.memory_space<vmem>>, vector<1x2x256xf32>,
    %c0_9 = arith.constant 0 : index
    %c0_10 = arith.constant 0 : index
    %12 = vector.load %arg5[%c0_9, %c0_10] : memref<2x4xf32, #tpu.memory_space<vmem>>, vector<2x4xf32>
    %13 = arith.truncf %12 : vector<2x4xf32> to vector<2x4xbf16>
    %cst_11 = arith.constant dense<0.000000e+00> : vector<2x256xf32>
    %14 = tpu.matmul %13, %2, %cst_11 {dimension_numbers = #tpu.dot_dimension_numbers<[1], [0], [0], [1], [0, 0, 1, 1], [], []>} : vector<2x4xbf16>, vector<4x256xbf16>, vector<2x256xf32> -> vector<2x256xf32>
    %c0_12 = arith.constant 0 : index
    %c0_13 = arith.constant 0 : index
    %15 = vector.load %arg6[%c0_12, %c0_13] : memref<2x1xf32, #tpu.memory_space<vmem>>, vector<2x1xf32>
    %16 = vector.broadcast %15 : vector<2x1xf32> to vector<2x256xf32>
    %17 = arith.addf %14, %16 : vector<2x256xf32>
    %c0_14 = arith.constant 0 : index
    %c0_15 = arith.constant 0 : index
    %c0_16 = arith.constant 0 : index
    %18 = vector.load %arg10[%c0_14, %c0_15, %c0_16] : memref<1x2x256xf32, #tpu.memory_space<vmem>>, vector<1x2x256xf32>
    %19 = vector.shape_cast %18 : vector<1x2x256xf32> to vector<2x256xf32>
    %20 = vector.shape_cast %17 : vector<2x256xf32> to vector<1x2x256xf32>
    tpu.vector_store %arg10[%c0_14, %c0_15, %c0_16], %20 {strides = array<i32>} : memref<1x2x256xf32, #tpu.memory_space<vmem>>, vector<1x2x256xf32>,
    %c0_17 = arith.constant 0 : index
    %c0_18 = arith.constant 0 : index
    %21 = vector.load %arg7[%c0_17, %c0_18] : memref<2x4xf32, #tpu.memory_space<vmem>>, vector<2x4xf32>
    %22 = arith.truncf %21 : vector<2x4xf32> to vector<2x4xbf16>
    %cst_19 = arith.constant dense<0.000000e+00> : vector<2x256xf32>
    %23 = tpu.matmul %22, %2, %cst_19 {dimension_numbers = #tpu.dot_dimension_numbers<[1], [0], [0], [1], [0, 0, 1, 1], [], []>} : vector<2x4xbf16>, vector<4x256xbf16>, vector<2x256xf32> -> vector<2x256xf32>
    %c0_20 = arith.constant 0 : index
    %c0_21 = arith.constant 0 : index
    %24 = vector.load %arg8[%c0_20, %c0_21] : memref<2x1xf32, #tpu.memory_space<vmem>>, vector<2x1xf32>
    %25 = vector.broadcast %24 : vector<2x1xf32> to vector<2x256xf32>
    %26 = arith.addf %23, %25 : vector<2x256xf32>
    %c0_22 = arith.constant 0 : index
    %c0_23 = arith.constant 0 : index
    %c0_24 = arith.constant 0 : index
    %27 = vector.load %arg11[%c0_22, %c0_23, %c0_24] : memref<1x2x256xf32, #tpu.memory_space<vmem>>, vector<1x2x256xf32>
    %28 = vector.shape_cast %27 : vector<1x2x256xf32> to vector<2x256xf32>
    %29 = vector.shape_cast %26 : vector<2x256xf32> to vector<1x2x256xf32>
    tpu.vector_store %arg11[%c0_22, %c0_23, %c0_24], %29 {strides = array<i32>} : memref<1x2x256xf32, #tpu.memory_space<vmem>>, vector<1x2x256xf32>,
    return
  }
  func.func @transform_0(%arg0: i32, %arg1: i32) -> (i32, i32, i32) {
    %c0_i32 = arith.constant 0 : i32
    %c0_i32_0 = arith.constant 0 : i32
    return %arg0, %c0_i32, %arg1 : i32, i32, i32
  }
  func.func @transform_1(%arg0: i32, %arg1: i32) -> (i32, i32) {
    %c0_i32 = arith.constant 0 : i32
    %c0_i32_0 = arith.constant 0 : i32
    %c0_i32_1 = arith.constant 0 : i32
    return %c0_i32, %c0_i32_0 : i32, i32
  }
  func.func @transform_2(%arg0: i32, %arg1: i32) -> (i32, i32) {
    %c0_i32 = arith.constant 0 : i32
    %c0_i32_0 = arith.constant 0 : i32
    %c0_i32_1 = arith.constant 0 : i32
    return %c0_i32, %c0_i32_0 : i32, i32
  }
  func.func @transform_3(%arg0: i32, %arg1: i32) -> (i32, i32) {
    %c0_i32 = arith.constant 0 : i32
    %c0_i32_0 = arith.constant 0 : i32
    %c0_i32_1 = arith.constant 0 : i32
    return %c0_i32, %c0_i32_0 : i32, i32
  }
  func.func @transform_4(%arg0: i32, %arg1: i32) -> (i32, i32) {
    %c0_i32 = arith.constant 0 : i32
    %c0_i32_0 = arith.constant 0 : i32
    %c0_i32_1 = arith.constant 0 : i32
    return %c0_i32, %c0_i32_0 : i32, i32
  }
  func.func @transform_5(%arg0: i32, %arg1: i32) -> (i32, i32) {
    %c0_i32 = arith.constant 0 : i32
    %c0_i32_0 = arith.constant 0 : i32
    %c0_i32_1 = arith.constant 0 : i32
    return %c0_i32, %c0_i32_0 : i32, i32
  }
  func.func @transform_6(%arg0: i32, %arg1: i32) -> (i32, i32) {
    %c0_i32 = arith.constant 0 : i32
    %c0_i32_0 = arith.constant 0 : i32
    %c0_i32_1 = arith.constant 0 : i32
    return %c0_i32, %c0_i32_0 : i32, i32
  }
  func.func @transform_7(%arg0: i32, %arg1: i32) -> (i32, i32, i32) {
    %c0_i32 = arith.constant 0 : i32
    %c0_i32_0 = arith.constant 0 : i32
    return %arg0, %c0_i32, %arg1 : i32, i32, i32
  }
  func.func @transform_8(%arg0: i32, %arg1: i32) -> (i32, i32, i32) {
    %c0_i32 = arith.constant 0 : i32
    %c0_i32_0 = arith.constant 0 : i32
    return %arg0, %c0_i32, %arg1 : i32, i32, i32
  }
  func.func @transform_9(%arg0: i32, %arg1: i32) -> (i32, i32, i32) {
    %c0_i32 = arith.constant 0 : i32
    %c0_i32_0 = arith.constant 0 : i32
    return %arg0, %c0_i32, %arg1 : i32, i32, i32
  }
}

module attributes {stable_mosaic.version = 11 : i64} {
  func.func @_attn_kernel(%arg0: i32, %arg1: i32, %arg2: memref<1x256x2xf32, #tpu.memory_space<vmem>>, %arg3: memref<1x2x256xf32, #tpu.memory_space<vmem>>, %arg4: memref<1x256x2xf32, #tpu.memory_space<vmem>>, %arg5: memref<1x4x256xf32, #tpu.memory_space<vmem>>, %arg6: memref<4x2xf32, #tpu.memory_space<vmem>>, %arg7: memref<4x1xf32, #tpu.memory_space<vmem>>, %arg8: memref<1x4x256xf32, #tpu.memory_space<vmem>>, %arg9: memref<256x2xf32, #tpu.memory_space<vmem>>) attributes {dimension_semantics = [#tpu.dimension_semantics<parallel>, #tpu.dimension_semantics<arbitrary>], iteration_bounds = array<i64: 2, 1>, scalar_prefetch = 0 : i64, scratch_operands = 1 : i64, tpu.core_type = #tpu.core_type<tc>, window_params = [{transform_indices = @transform_0, window_bounds = array<i64: 1, 256, 2>}, {transform_indices = @transform_1, window_bounds = array<i64: 1, 2, 256>}, {transform_indices = @transform_2, window_bounds = array<i64: 1, 256, 2>}, {transform_indices = @transform_3, window_bounds = array<i64: 1, 4, 256>}, {pipeline_mode = #tpu.pipeline_mode<synchronous>, transform_indices = @transform_4, window_bounds = array<i64: 4, 2>}, {pipeline_mode = #tpu.pipeline_mode<synchronous>, transform_indices = @transform_5, window_bounds = array<i64: 4, 1>}, {transform_indices = @transform_6, window_bounds = array<i64: 1, 4, 256>}]} {
    %c0_i32 = arith.constant 0 : i32
    %0 = arith.cmpi eq, %arg1, %c0_i32 : i32
    %1 = arith.extui %0 : i1 to i32
    %c0_i32_0 = arith.constant 0 : i32
    %2 = arith.cmpi ne, %1, %c0_i32_0 : i32
    scf.if %2 {
      %cst_18 = arith.constant 0.000000e+00 : f32
      %31 = vector.broadcast %cst_18 : f32 to vector<256x2xf32>
      %c0_19 = arith.constant 0 : index
      %c0_20 = arith.constant 0 : index
      %32 = vector.load %arg9[%c0_19, %c0_20] : memref<256x2xf32, #tpu.memory_space<vmem>>, vector<256x2xf32>
      tpu.vector_store %arg9[%c0_19, %c0_20], %31 {strides = array<i32>} : memref<256x2xf32, #tpu.memory_space<vmem>>, vector<256x2xf32>,
    } else {
    }
    %c0 = arith.constant 0 : index
    %c0_1 = arith.constant 0 : index
    %c0_2 = arith.constant 0 : index
    %3 = vector.load %arg2[%c0, %c0_1, %c0_2] : memref<1x256x2xf32, #tpu.memory_space<vmem>>, vector<1x256x2xf32>
    %4 = vector.shape_cast %3 : vector<1x256x2xf32> to vector<256x2xf32>
    %5 = arith.truncf %4 : vector<256x2xf32> to vector<256x2xbf16>
    %c0_3 = arith.constant 0 : index
    %c0_4 = arith.constant 0 : index
    %c0_5 = arith.constant 0 : index
    %6 = vector.load %arg3[%c0_3, %c0_4, %c0_5] : memref<1x2x256xf32, #tpu.memory_space<vmem>>, vector<1x2x256xf32>
    %7 = vector.shape_cast %6 : vector<1x2x256xf32> to vector<2x256xf32>
    %8 = arith.truncf %7 : vector<2x256xf32> to vector<2x256xbf16>
    %cst = arith.constant dense<0.000000e+00> : vector<256x256xf32>
    %9 = tpu.matmul %5, %8, %cst {dimension_numbers = #tpu.dot_dimension_numbers<[1], [0], [0], [1], [0, 0, 1, 1], [], []>} : vector<256x2xbf16>, vector<2x256xbf16>, vector<256x256xf32> -> vector<256x256xf32>
    %cst_6 = arith.constant dense<0xFF800000> : vector<256xf32>
    %10 = vector.multi_reduction <maximumf>, %9, %cst_6 [0] : vector<256x256xf32> to vector<256xf32>
    %11 = vector.shape_cast %10 : vector<256xf32> to vector<1x256xf32>
    %12 = vector.broadcast %11 : vector<1x256xf32> to vector<256x256xf32>
    %13 = arith.subf %9, %12 : vector<256x256xf32>
    %14 = math.exp %13 : vector<256x256xf32>
    %cst_7 = arith.constant dense<0.000000e+00> : vector<256xf32>
    %15 = vector.multi_reduction <add>, %14, %cst_7 [0] : vector<256x256xf32> to vector<256xf32>
    %16 = vector.shape_cast %15 : vector<256xf32> to vector<1x256xf32>
    %17 = tpu.reciprocal %16 {approx = true} : vector<1x256xf32> -> vector<1x256xf32>
    %18 = vector.broadcast %17 : vector<1x256xf32> to vector<256x256xf32>
    %19 = arith.mulf %14, %18 : vector<256x256xf32>
    %c0_8 = arith.constant 0 : index
    %c0_9 = arith.constant 0 : index
    %20 = vector.load %arg9[%c0_8, %c0_9] : memref<256x2xf32, #tpu.memory_space<vmem>>, vector<256x2xf32>
    %21 = arith.truncf %19 : vector<256x256xf32> to vector<256x256xbf16>
    %c0_10 = arith.constant 0 : index
    %c0_11 = arith.constant 0 : index
    %c0_12 = arith.constant 0 : index
    %22 = vector.load %arg4[%c0_10, %c0_11, %c0_12] : memref<1x256x2xf32, #tpu.memory_space<vmem>>, vector<1x256x2xf32>
    %23 = vector.shape_cast %22 : vector<1x256x2xf32> to vector<256x2xf32>
    %24 = arith.truncf %23 : vector<256x2xf32> to vector<256x2xbf16>
    %cst_13 = arith.constant dense<0.000000e+00> : vector<256x2xf32>
    %25 = tpu.matmul %21, %24, %cst_13 {dimension_numbers = #tpu.dot_dimension_numbers<[1], [0], [0], [1], [0, 0, 1, 1], [], []>} : vector<256x256xbf16>, vector<256x2xbf16>, vector<256x2xf32> -> vector<256x2xf32>
    %26 = arith.addf %20, %25 : vector<256x2xf32>
    %c0_14 = arith.constant 0 : index
    %c0_15 = arith.constant 0 : index
    %27 = vector.load %arg9[%c0_14, %c0_15] : memref<256x2xf32, #tpu.memory_space<vmem>>, vector<256x2xf32>
    tpu.vector_store %arg9[%c0_14, %c0_15], %26 {strides = array<i32>} : memref<256x2xf32, #tpu.memory_space<vmem>>, vector<256x2xf32>,
    %c0_i32_16 = arith.constant 0 : i32
    %28 = arith.cmpi eq, %arg1, %c0_i32_16 : i32
    %29 = arith.extui %28 : i1 to i32
    %c0_i32_17 = arith.constant 0 : i32
    %30 = arith.cmpi ne, %29, %c0_i32_17 : i32
    scf.if %30 {
      %c0_18 = arith.constant 0 : index
      %c0_19 = arith.constant 0 : index
      %31 = vector.load %arg9[%c0_18, %c0_19] : memref<256x2xf32, #tpu.memory_space<vmem>>, vector<256x2xf32>
      %c0_20 = arith.constant 0 : index
      %c0_21 = arith.constant 0 : index
      %32 = vector.load %arg6[%c0_20, %c0_21] : memref<4x2xf32, #tpu.memory_space<vmem>>, vector<4x2xf32>
      %cst_22 = arith.constant dense<0.000000e+00> : vector<4x256xf32>
      %33 = tpu.matmul %32, %31, %cst_22 {dimension_numbers = #tpu.dot_dimension_numbers<[1], [1], [0], [0], [0, 0, 1, 0], [], []>} : vector<4x2xf32>, vector<256x2xf32>, vector<4x256xf32> -> vector<4x256xf32>
      %c0_23 = arith.constant 0 : index
      %c0_24 = arith.constant 0 : index
      %c0_25 = arith.constant 0 : index
      %34 = vector.load %arg5[%c0_23, %c0_24, %c0_25] : memref<1x4x256xf32, #tpu.memory_space<vmem>>, vector<1x4x256xf32>
      %35 = vector.shape_cast %34 : vector<1x4x256xf32> to vector<4x256xf32>
      %36 = arith.addf %35, %33 : vector<4x256xf32>
      %c0_26 = arith.constant 0 : index
      %c0_27 = arith.constant 0 : index
      %37 = vector.load %arg7[%c0_26, %c0_27] : memref<4x1xf32, #tpu.memory_space<vmem>>, vector<4x1xf32>
      %38 = vector.broadcast %37 : vector<4x1xf32> to vector<4x256xf32>
      %39 = arith.addf %36, %38 : vector<4x256xf32>
      %c0_28 = arith.constant 0 : index
      %c0_29 = arith.constant 0 : index
      %c0_30 = arith.constant 0 : index
      %40 = vector.load %arg8[%c0_28, %c0_29, %c0_30] : memref<1x4x256xf32, #tpu.memory_space<vmem>>, vector<1x4x256xf32>
      %41 = vector.shape_cast %40 : vector<1x4x256xf32> to vector<4x256xf32>
      %42 = vector.shape_cast %39 : vector<4x256xf32> to vector<1x4x256xf32>
      tpu.vector_store %arg8[%c0_28, %c0_29, %c0_30], %42 {strides = array<i32>} : memref<1x4x256xf32, #tpu.memory_space<vmem>>, vector<1x4x256xf32>,
    } else {
    }
    return
  }
  func.func @transform_0(%arg0: i32, %arg1: i32) -> (i32, i32, i32) {
    %c0_i32 = arith.constant 0 : i32
    %c0_i32_0 = arith.constant 0 : i32
    %c0_i32_1 = arith.constant 0 : i32
    return %arg0, %c0_i32, %c0_i32_0 : i32, i32, i32
  }
  func.func @transform_1(%arg0: i32, %arg1: i32) -> (i32, i32, i32) {
    %c0_i32 = arith.constant 0 : i32
    %c0_i32_0 = arith.constant 0 : i32
    return %arg0, %c0_i32, %arg1 : i32, i32, i32
  }
  func.func @transform_2(%arg0: i32, %arg1: i32) -> (i32, i32, i32) {
    %c0_i32 = arith.constant 0 : i32
    %c0_i32_0 = arith.constant 0 : i32
    return %arg0, %arg1, %c0_i32 : i32, i32, i32
  }
  func.func @transform_3(%arg0: i32, %arg1: i32) -> (i32, i32, i32) {
    %c0_i32 = arith.constant 0 : i32
    %c0_i32_0 = arith.constant 0 : i32
    %c0_i32_1 = arith.constant 0 : i32
    return %arg0, %c0_i32, %c0_i32_0 : i32, i32, i32
  }
  func.func @transform_4(%arg0: i32, %arg1: i32) -> (i32, i32) {
    %c0_i32 = arith.constant 0 : i32
    %c0_i32_0 = arith.constant 0 : i32
    %c0_i32_1 = arith.constant 0 : i32
    return %c0_i32, %c0_i32_0 : i32, i32
  }
  func.func @transform_5(%arg0: i32, %arg1: i32) -> (i32, i32) {
    %c0_i32 = arith.constant 0 : i32
    %c0_i32_0 = arith.constant 0 : i32
    %c0_i32_1 = arith.constant 0 : i32
    return %c0_i32, %c0_i32_0 : i32, i32
  }
  func.func @transform_6(%arg0: i32, %arg1: i32) -> (i32, i32, i32) {
    %c0_i32 = arith.constant 0 : i32
    %c0_i32_0 = arith.constant 0 : i32
    %c0_i32_1 = arith.constant 0 : i32
    return %arg0, %c0_i32, %c0_i32_0 : i32, i32, i32
  }
}

</mosaic_0001>

<llo_original>
// kernel: non_local_block.2
$region0: #{non_local_block.2}
  #allocation0 [shape = 'u32[]', space=smem, size = 0x4, offset = 0x4, fixed_abs, tag = 'smem constant byte address 0x4 - core index']
  #allocation1 [shape = 'u32[144,128]{1,0:T(1,128)}', space=vmem, size = 0x12000, scoped, tag = 'internal scratch']
  %s0 = inlined_call_operand.vmem [shape: f32[2,4,256], index: 0, kind: input, shape index: {}]
  %s1 = inlined_call_operand.vmem [shape: f32[2,4], index: 1, kind: input, shape index: {}]
  %s2 = inlined_call_operand.vmem [shape: f32[2,1], index: 2, kind: input, shape index: {}]
  %s3 = inlined_call_operand.vmem [shape: f32[2,4], index: 3, kind: input, shape index: {}]
  %s4 = inlined_call_operand.vmem [shape: f32[2,1], index: 4, kind: input, shape index: {}]
  %s5 = inlined_call_operand.vmem [shape: f32[2,4], index: 5, kind: input, shape index: {}]
  %s6 = inlined_call_operand.vmem [shape: f32[2,1], index: 6, kind: input, shape index: {}]
  %s7 = inlined_call_operand.vmem [shape: f32[2,2,256], index: 7, kind: output, shape index: {0}]
  %s8 = inlined_call_operand.vmem [shape: f32[2,2,256], index: 8, kind: output, shape index: {1}]
  %s9 = inlined_call_operand.vmem [shape: f32[2,2,256], index: 9, kind: output, shape index: {2}]
  %10 = xla_tuple %s7, %s8, %s9
  %s11 = sld [smem:[#allocation0]]
  $region77: #{non_local_block.2} parent=0
    _
  %s13 = ssub.s32 1, %s11
  %s14 = scalar_select 0, %s13, %s11
  loop: start=0, step=1, limit=4
  $region2: #{non_local_block.2} parent=0 // loop_pre_header
    _
  $region3: #{non_local_block.2} parent=0 // loop_header
    %s16 = sphi 0, %s20
    %p17 = scmp.ge.s32.totalorder %s16, 4
    %s23 = sphi 0, %s35
    %s24 = sphi 0, %s31
    %s25 = sphi 0, %s23
    %s26 = sphi 0, %s24
    %s27 = sphi 0, %s25
    %s28 = sphi 0, %s26
    %s40 = sphi 0, %s42
    %s43 = sphi 0, %s40
    %s44 = sphi 0, %s43
    %s60 = sphi 0, %s44
    %s64 = sphi 0, %s64
    %s66 = sphi 0, %s64
    %s67 = sphi 0, %s66
    %s81 = sphi 0, %s67
    %s85 = sphi 0, %s85
    %s87 = sphi 0, %s85
    %s88 = sphi 0, %s87
    %s102 = sphi 0, %s88
    %s106 = sphi 0, %s106
    %s108 = sphi 0, %s106
    %s109 = sphi 0, %s108
    %s123 = sphi 0, %s109
    %s127 = sphi 0, %s127
    %s129 = sphi 0, %s127
    %s130 = sphi 0, %s129
    %s144 = sphi 0, %s130
    %s148 = sphi 0, %s148
    %s150 = sphi 0, %s148
    %s151 = sphi 0, %s150
    %s165 = sphi 0, %s151
    %s169 = sphi 0, %s169
    %s171 = sphi 0, %s169
    %s172 = sphi 0, %s171
    %s186 = sphi 0, %s172
    %s194 = sphi 0, %s196
    %s197 = sphi 0, %s194
    %s198 = sphi 0, %s197
    %s214 = sphi 0, %s198
    %s222 = sphi 0, %s224
    %s225 = sphi 0, %s222
    %s226 = sphi 0, %s225
    %s242 = sphi 0, %s226
    %s250 = sphi 0, %s252
    %s253 = sphi 0, %s250
    %s254 = sphi 0, %s253
    %s270 = sphi 0, %s254
  $region4: #{non_local_block.2} parent=0 // loop_header_branch
    %19 = sbr.rel (%p17) target = $region8
  $region5: #{non_local_block.2} parent=0 // loop_body
    %s21 = ssub.s32 %s16, 1
    %s22 = ssub.s32 %s16, 2
    %s29 = sadd.s32 1, %s24
    %p30 = scmp.ge.s32.totalorder %s29, 1
    %s31 = scalar_select %p30, 0, %s29
    %s32 = sadd.s32 1, %s23
    %s33 = scalar_select %p30, %s32, %s23
    %p34 = scmp.ge.s32.totalorder %s33, 2
    %s35 = scalar_select %p34, 0, %s33
    %s36 = ssub.s32 %s23, %s35
    %s37 = ssub.s32 %s24, %s31
    %s38 = sor.u32 %s36, %s37
    %p39 = scmp.eq.s32.totalorder %s38, 0
    %s41 = sadd.s32 %s40, 1
    %s42 = scalar_select %p39, %s40, %s41
    %p45 = pneg %p39
    %p46 = scmp.eq.s32.totalorder %s16, 1
    %p47 = por %p45, %p46
    %p48 = scmp.ne.s32.totalorder %s40, %s43
    %p49 = scmp.eq.s32.totalorder %s16, 0
    %p50 = por %p48, %p49
    %p51 = scmp.ne.s32.totalorder %s40, %s43
    %p52 = scmp.eq.s32.totalorder %s21, 1
    %p53 = por %p51, %p52
    %p54 = scmp.ne.s32.totalorder %s43, %s44
    %p55 = scmp.eq.s32.totalorder %s21, 0
    %p56 = por %p54, %p55
    %p57 = scmp.ne.s32.totalorder %s43, %s44
    %p58 = scmp.eq.s32.totalorder %s22, 1
    %p59 = por %p57, %p58
    %p61 = scmp.ne.s32.totalorder %s44, %s60
    %p62 = scmp.eq.s32.totalorder %s22, 0
    %p63 = por %p61, %p62
    %s65 = sadd.s32 %s64, 1
    %p68 = scmp.eq.s32.totalorder %s16, 1
    %p69 = scmp.ne.s32.totalorder %s64, %s66
    %p70 = scmp.eq.s32.totalorder %s16, 0
    %p71 = por %p69, %p70
    %p72 = scmp.ne.s32.totalorder %s64, %s66
    %p73 = scmp.eq.s32.totalorder %s21, 1
    %p74 = por %p72, %p73
    %p75 = scmp.ne.s32.totalorder %s66, %s67
    %p76 = scmp.eq.s32.totalorder %s21, 0
    %p77 = por %p75, %p76
    %p78 = scmp.ne.s32.totalorder %s66, %s67
    %p79 = scmp.eq.s32.totalorder %s22, 1
    %p80 = por %p78, %p79
    %p82 = scmp.ne.s32.totalorder %s67, %s81
    %p83 = scmp.eq.s32.totalorder %s22, 0
    %p84 = por %p82, %p83
    %s86 = sadd.s32 %s85, 1
    %p89 = scmp.eq.s32.totalorder %s16, 1
    %p90 = scmp.ne.s32.totalorder %s85, %s87
    %p91 = scmp.eq.s32.totalorder %s16, 0
    %p92 = por %p90, %p91
    %p93 = scmp.ne.s32.totalorder %s85, %s87
    %p94 = scmp.eq.s32.totalorder %s21, 1
    %p95 = por %p93, %p94
    %p96 = scmp.ne.s32.totalorder %s87, %s88
    %p97 = scmp.eq.s32.totalorder %s21, 0
    %p98 = por %p96, %p97
    %p99 = scmp.ne.s32.totalorder %s87, %s88
    %p100 = scmp.eq.s32.totalorder %s22, 1
    %p101 = por %p99, %p100
    %p103 = scmp.ne.s32.totalorder %s88, %s102
    %p104 = scmp.eq.s32.totalorder %s22, 0
    %p105 = por %p103, %p104
    %s107 = sadd.s32 %s106, 1
    %p110 = scmp.eq.s32.totalorder %s16, 1
    %p111 = scmp.ne.s32.totalorder %s106, %s108
    %p112 = scmp.eq.s32.totalorder %s16, 0
    %p113 = por %p111, %p112
    %p114 = scmp.ne.s32.totalorder %s106, %s108
    %p115 = scmp.eq.s32.totalorder %s21, 1
    %p116 = por %p114, %p115
    %p117 = scmp.ne.s32.totalorder %s108, %s109
    %p118 = scmp.eq.s32.totalorder %s21, 0
    %p119 = por %p117, %p118
    %p120 = scmp.ne.s32.totalorder %s108, %s109
    %p121 = scmp.eq.s32.totalorder %s22, 1
    %p122 = por %p120, %p121
    %p124 = scmp.ne.s32.totalorder %s109, %s123
    %p125 = scmp.eq.s32.totalorder %s22, 0
    %p126 = por %p124, %p125
    %s128 = sadd.s32 %s127, 1
    %p131 = scmp.eq.s32.totalorder %s16, 1
    %p132 = scmp.ne.s32.totalorder %s127, %s129
    %p133 = scmp.eq.s32.totalorder %s16, 0
    %p134 = por %p132, %p133
    %p135 = scmp.ne.s32.totalorder %s127, %s129
    %p136 = scmp.eq.s32.totalorder %s21, 1
    %p137 = por %p135, %p136
    %p138 = scmp.ne.s32.totalorder %s129, %s130
    %p139 = scmp.eq.s32.totalorder %s21, 0
    %p140 = por %p138, %p139
    %p141 = scmp.ne.s32.totalorder %s129, %s130
    %p142 = scmp.eq.s32.totalorder %s22, 1
    %p143 = por %p141, %p142
    %p145 = scmp.ne.s32.totalorder %s130, %s144
    %p146 = scmp.eq.s32.totalorder %s22, 0
    %p147 = por %p145, %p146
    %s149 = sadd.s32 %s148, 1
    %p152 = scmp.eq.s32.totalorder %s16, 1
    %p153 = scmp.ne.s32.totalorder %s148, %s150
    %p154 = scmp.eq.s32.totalorder %s16, 0
    %p155 = por %p153, %p154
    %p156 = scmp.ne.s32.totalorder %s148, %s150
    %p157 = scmp.eq.s32.totalorder %s21, 1
    %p158 = por %p156, %p157
    %p159 = scmp.ne.s32.totalorder %s150, %s151
    %p160 = scmp.eq.s32.totalorder %s21, 0
    %p161 = por %p159, %p160
    %p162 = scmp.ne.s32.totalorder %s150, %s151
    %p163 = scmp.eq.s32.totalorder %s22, 1
    %p164 = por %p162, %p163
    %p166 = scmp.ne.s32.totalorder %s151, %s165
    %p167 = scmp.eq.s32.totalorder %s22, 0
    %p168 = por %p166, %p167
    %s170 = sadd.s32 %s169, 1
    %p173 = scmp.eq.s32.totalorder %s16, 1
    %p174 = scmp.ne.s32.totalorder %s169, %s171
    %p175 = scmp.eq.s32.totalorder %s16, 0
    %p176 = por %p174, %p175
    %p177 = scmp.ne.s32.totalorder %s169, %s171
    %p178 = scmp.eq.s32.totalorder %s21, 1
    %p179 = por %p177, %p178
    %p180 = scmp.ne.s32.totalorder %s171, %s172
    %p181 = scmp.eq.s32.totalorder %s21, 0
    %p182 = por %p180, %p181
    %p183 = scmp.ne.s32.totalorder %s171, %s172
    %p184 = scmp.eq.s32.totalorder %s22, 1
    %p185 = por %p183, %p184
    %p187 = scmp.ne.s32.totalorder %s172, %s186
    %p188 = scmp.eq.s32.totalorder %s22, 0
    %p189 = por %p187, %p188
    %s190 = ssub.s32 %s23, %s35
    %s191 = ssub.s32 %s24, %s31
    %s192 = sor.u32 %s190, %s191
    %p193 = scmp.eq.s32.totalorder %s192, 0
    %s195 = sadd.s32 %s194, 1
    %s196 = scalar_select %p193, %s194, %s195
    %p199 = pneg %p193
    %p200 = scmp.eq.s32.totalorder %s16, 1
    %p201 = por %p199, %p200
    %p202 = scmp.ne.s32.totalorder %s194, %s197
    %p203 = scmp.eq.s32.totalorder %s16, 0
    %p204 = por %p202, %p203
    %p205 = scmp.ne.s32.totalorder %s194, %s197
    %p206 = scmp.eq.s32.totalorder %s21, 1
    %p207 = por %p205, %p206
    %p208 = scmp.ne.s32.totalorder %s197, %s198
    %p209 = scmp.eq.s32.totalorder %s21, 0
    %p210 = por %p208, %p209
    %p211 = scmp.ne.s32.totalorder %s197, %s198
    %p212 = scmp.eq.s32.totalorder %s22, 1
    %p213 = por %p211, %p212
    %p215 = scmp.ne.s32.totalorder %s198, %s214
    %p216 = scmp.eq.s32.totalorder %s22, 0
    %p217 = por %p215, %p216
    %s218 = ssub.s32 %s23, %s35
    %s219 = ssub.s32 %s24, %s31
    %s220 = sor.u32 %s218, %s219
    %p221 = scmp.eq.s32.totalorder %s220, 0
    %s223 = sadd.s32 %s222, 1
    %s224 = scalar_select %p221, %s222, %s223
    %p227 = pneg %p221
    %p228 = scmp.eq.s32.totalorder %s16, 1
    %p229 = por %p227, %p228
    %p230 = scmp.ne.s32.totalorder %s222, %s225
    %p231 = scmp.eq.s32.totalorder %s16, 0
    %p232 = por %p230, %p231
    %p233 = scmp.ne.s32.totalorder %s222, %s225
    %p234 = scmp.eq.s32.totalorder %s21, 1
    %p235 = por %p233, %p234
    %p236 = scmp.ne.s32.totalorder %s225, %s226
    %p237 = scmp.eq.s32.totalorder %s21, 0
    %p238 = por %p236, %p237
    %p239 = scmp.ne.s32.totalorder %s225, %s226
    %p240 = scmp.eq.s32.totalorder %s22, 1
    %p241 = por %p239, %p240
    %p243 = scmp.ne.s32.totalorder %s226, %s242
    %p244 = scmp.eq.s32.totalorder %s22, 0
    %p245 = por %p243, %p244
    %s246 = ssub.s32 %s23, %s35
    %s247 = ssub.s32 %s24, %s31
    %s248 = sor.u32 %s246, %s247
    %p249 = scmp.eq.s32.totalorder %s248, 0
    %s251 = sadd.s32 %s250, 1
    %s252 = scalar_select %p249, %s250, %s251
    %p255 = pneg %p249
    %p256 = scmp.eq.s32.totalorder %s16, 1
    %p257 = por %p255, %p256
    %p258 = scmp.ne.s32.totalorder %s250, %s253
    %p259 = scmp.eq.s32.totalorder %s16, 0
    %p260 = por %p258, %p259
    %p261 = scmp.ne.s32.totalorder %s250, %s253
    %p262 = scmp.eq.s32.totalorder %s21, 1
    %p263 = por %p261, %p262
    %p264 = scmp.ne.s32.totalorder %s253, %s254
    %p265 = scmp.eq.s32.totalorder %s21, 0
    %p266 = por %p264, %p265
    %p267 = scmp.ne.s32.totalorder %s253, %s254
    %p268 = scmp.eq.s32.totalorder %s22, 1
    %p269 = por %p267, %p268
    %p271 = scmp.ne.s32.totalorder %s254, %s270
    %p272 = scmp.eq.s32.totalorder %s22, 0
    %p273 = por %p271, %p272
    %p274 = scmp.le.s32.totalorder 1, %s16
    %p275 = scmp.lt.s32.totalorder %s16, 3
    %p276 = pnand %p274, %p275
    %p277 = pneg %p276
    // Predicated region
    $region9: #{non_local_block.2} parent=5 // pred_check
      _
    $region10: #{non_local_block.2} parent=5 // pred_check_branch
      %279 = sbr.rel (%p276) target = $region12
    $region11: #{non_local_block.2} parent=5 // pred_region
      %s280 = ssub.s32 %s16, 1
      // Predicated region
      $region13: #{non_local_block.2} parent=11 // pred_check
        %p281 = pneg %p77
      $region14: #{non_local_block.2} parent=11 // pred_check_branch
        %283 = sbr.rel (%p281) target = $region16
      $region15: #{non_local_block.2} parent=11 // pred_region
        _
      $region16: #{non_local_block.2} parent=11 // pred_fallthru
        _
      // Predicated region
      $region17: #{non_local_block.2} parent=11 // pred_check
        %p284 = pneg %p98
      $region18: #{non_local_block.2} parent=11 // pred_check_branch
        %286 = sbr.rel (%p284) target = $region20
      $region19: #{non_local_block.2} parent=11 // pred_region
        _
      $region20: #{non_local_block.2} parent=11 // pred_fallthru
        _
      // Predicated region
      $region21: #{non_local_block.2} parent=11 // pred_check
        %p287 = pneg %p119
      $region22: #{non_local_block.2} parent=11 // pred_check_branch
        %289 = sbr.rel (%p287) target = $region24
      $region23: #{non_local_block.2} parent=11 // pred_region
        _
      $region24: #{non_local_block.2} parent=11 // pred_fallthru
        _
      // Predicated region
      $region25: #{non_local_block.2} parent=11 // pred_check
        %p290 = pneg %p140
      $region26: #{non_local_block.2} parent=11 // pred_check_branch
        %292 = sbr.rel (%p290) target = $region28
      $region27: #{non_local_block.2} parent=11 // pred_region
        _
      $region28: #{non_local_block.2} parent=11 // pred_fallthru
        _
      // Predicated region
      $region29: #{non_local_block.2} parent=11 // pred_check
        %p293 = pneg %p161
      $region30: #{non_local_block.2} parent=11 // pred_check_branch
        %295 = sbr.rel (%p293) target = $region32
      $region31: #{non_local_block.2} parent=11 // pred_region
        _
      $region32: #{non_local_block.2} parent=11 // pred_fallthru
        _
      // Predicated region
      $region33: #{non_local_block.2} parent=11 // pred_check
        %p296 = pneg %p182
      $region34: #{non_local_block.2} parent=11 // pred_check_branch
        %298 = sbr.rel (%p296) target = $region36
      $region35: #{non_local_block.2} parent=11 // pred_region
        _
      $region36: #{non_local_block.2} parent=11 // pred_fallthru
        _
    $region12: #{non_local_block.2} parent=5 // pred_fallthru
      _
    %p299 = scmp.lt.s32.totalorder %s16, 2
    // Predicated region
    $region37: #{non_local_block.2} parent=5 // pred_check
      %p300 = pneg %p299
    $region38: #{non_local_block.2} parent=5 // pred_check_branch
      %302 = sbr.rel (%p300) target = $region40
    $region39: #{non_local_block.2} parent=5 // pred_region
      // Predicated region
      $region41: #{non_local_block.2} parent=39 // pred_check
        %p303 = pneg %p50
      $region42: #{non_local_block.2} parent=39 // pred_check_branch
        %305 = sbr.rel (%p303) target = $region44
      $region43: #{non_local_block.2} parent=39 // pred_region
        %s306 = smul.u32 2, %s24
        %p307 = scmp.lt.s32.totalorder %s23, 1
        %s308 = scalar_select %p307, %s23, 1
        %p309 = scmp.lt.s32.totalorder %s306, 1
        %s310 = scalar_select %p309, %s306, 1
        %s311 = smul.addr %s308, 2
        %s312 = sadd.s32 %s310, %s311
        %s313 = smul.addr %s312, 4
        %s314 = scalar_lea.vmem %s0, %s313
        %s315 = smul.u32 2, %s24
      $region44: #{non_local_block.2} parent=39 // pred_fallthru
        _
    $region40: #{non_local_block.2} parent=5 // pred_fallthru
      _
    %p316 = scmp.le.s32.totalorder 1, %s16
    %p317 = scmp.lt.s32.totalorder %s16, 3
    %p318 = pnand %p316, %p317
    %p319 = pneg %p318
    // Predicated region
    $region45: #{non_local_block.2} parent=5 // pred_check
      _
    $region46: #{non_local_block.2} parent=5 // pred_check_branch
      %321 = sbr.rel (%p318) target = $region48
    $region47: #{non_local_block.2} parent=5 // pred_region
      %s322 = ssub.s32 %s16, 1
      %s323 = smul.u32 2, %s26
      %p324 = scmp.lt.s32.totalorder %s25, 1
      %s325 = scalar_select %p324, %s25, 1
      %p326 = scmp.lt.s32.totalorder %s323, 1
      %s327 = scalar_select %p326, %s323, 1
      %s328 = smul.addr %s325, 2
      %s329 = sadd.s32 %s327, %s328
      %s330 = smul.addr %s329, 4
      %s331 = scalar_lea.vmem %s0, %s330
      %p332 = pneg %p56
      %p333 = pneg %p53
      %p334 = pneg %p77
      %p335 = pneg %p74
      %p336 = pneg %p98
      %p337 = pneg %p95
      %p338 = pneg %p119
      %p339 = pneg %p116
      %p340 = pneg %p140
      %p341 = pneg %p137
      %p342 = pneg %p161
      %p343 = pneg %p158
      %p344 = pneg %p182
      %p345 = pneg %p179
      %p346 = pneg %p210
      %p347 = pneg %p207
      %s348 = smul.u32 2, %s26
      %p349 = scmp.lt.s32.totalorder %s25, 1
      %s350 = scalar_select %p349, %s25, 1
      %p351 = scmp.lt.s32.totalorder %s348, 1
      %s352 = scalar_select %p351, %s348, 1
      %s353 = smul.addr %s350, 2
      %s354 = sadd.s32 %s352, %s353
      %s355 = smul.addr %s354, 2
      %s356 = scalar_lea.vmem %s7, %s355
      %p357 = pneg %p238
      %p358 = pneg %p235
      %s359 = smul.u32 2, %s26
      %p360 = scmp.lt.s32.totalorder %s25, 1
      %s361 = scalar_select %p360, %s25, 1
      %p362 = scmp.lt.s32.totalorder %s359, 1
      %s363 = scalar_select %p362, %s359, 1
      %s364 = smul.addr %s361, 2
      %s365 = sadd.s32 %s363, %s364
      %s366 = smul.addr %s365, 2
      %s367 = scalar_lea.vmem %s8, %s366
      %p368 = pneg %p266
      %p369 = pneg %p263
      %s370 = smul.u32 2, %s26
      %p371 = scmp.lt.s32.totalorder %s25, 1
      %s372 = scalar_select %p371, %s25, 1
      %p373 = scmp.lt.s32.totalorder %s370, 1
      %s374 = scalar_select %p373, %s370, 1
      %s375 = smul.addr %s372, 2
      %s376 = sadd.s32 %s374, %s375
      %s377 = smul.addr %s376, 2
      %s378 = scalar_lea.vmem %s9, %s377
      %s379 = smul.u32 2, %s26
      %p380 = scmp.lt.s32.totalorder %s25, 1
      %s381 = scalar_select %p380, %s25, 1
      %p382 = scmp.lt.s32.totalorder %s379, 1
      %s383 = scalar_select %p382, %s379, 1
      %s384 = smul.addr %s381, 2
      %s385 = sadd.s32 %s383, %s384
      %s386 = smul.addr %s385, 4
      %s387 = scalar_lea.vmem %s0, %s386
      %s388 = smul.u32 2, %s26
      %s389 = smul.u32 2, %s26
      %p390 = scmp.lt.s32.totalorder %s25, 1
      %s391 = scalar_select %p390, %s25, 1
      %p392 = scmp.lt.s32.totalorder %s389, 1
      %s393 = scalar_select %p392, %s389, 1
      %s394 = smul.addr %s391, 2
      %s395 = sadd.s32 %s393, %s394
      %s396 = smul.addr %s395, 2
      %s397 = scalar_lea.vmem %s7, %s396
      %s398 = smul.u32 2, %s26
      %s399 = smul.u32 2, %s26
      %p400 = scmp.lt.s32.totalorder %s25, 1
      %s401 = scalar_select %p400, %s25, 1
      %p402 = scmp.lt.s32.totalorder %s399, 1
      %s403 = scalar_select %p402, %s399, 1
      %s404 = smul.addr %s401, 2
      %s405 = sadd.s32 %s403, %s404
      %s406 = smul.addr %s405, 2
      %s407 = scalar_lea.vmem %s8, %s406
      %s408 = smul.u32 2, %s26
      %s409 = smul.u32 2, %s26
      %p410 = scmp.lt.s32.totalorder %s25, 1
      %s411 = scalar_select %p410, %s25, 1
      %p412 = scmp.lt.s32.totalorder %s409, 1
      %s413 = scalar_select %p412, %s409, 1
      %s414 = smul.addr %s411, 2
      %s415 = sadd.s32 %s413, %s414
      %s416 = smul.addr %s415, 2
      %s417 = scalar_lea.vmem %s9, %s416
      %s418 = smul.u32 2, %s26
      %v420 = vld [vmem:[%s387] sm:$0xff]
      %v422 = vcombine.high %v420, %v420
      %v424 = vpack.c.bf16 %v420, %v420
      %v425 = vpack.c.bf16 %v422, %v422
      %v426 = vld [vmem:[%s1] sm:$0x3]
      %v427 = vpack.c.bf16 %v426, %v426
      %v428 = vld [vmem:[%s2] sm:$0x3]
      %430 = vset.pattern.permute.xlu0 0
      %431 = vperm.xlu0 %430, %v428
      %v432 = vpop.permute.xlu0 %431
      %vm434 = vcmask 31744
      %v436 = vsel %vm434, %v427, 0
      %vm438 = vcmask 1041408
      %v440 = vsel %vm438, %v424, 0
      %v443 = vsel %vm438, %v425, 0
      %445 = vmatprep.subr.bf16.mxu0 0
      %446 = vmatpush1.bf16.msra.mxu0 0
      %447 = vmatprep.subr.bf16.mxu0 0
      %448 = vmatpush1.bf16.msra.mxu0 0
      %449 = vmatprep.subr.bf16.mxu0 0
      %450 = vmatpush1.bf16.msra.mxu0 0
      %451 = vmatprep.subr.bf16.mxu0 0
      %452 = vmatpush1.bf16.msra.mxu0 0
      %453 = vmatprep.subr.bf16.mxu0 0
      %454 = vmatpush1.bf16.msra.mxu0 0
      %455 = vmatprep.subr.bf16.mxu0 0
      %456 = vmatpush1.bf16.msra.mxu0 0
      %457 = vmatprep.subr.bf16.mxu0 0
      %458 = vmatpush1.bf16.msra.mxu0 0
      %459 = vmatprep.subr.bf16.mxu0 %v443
      %460 = vmatpush1.bf16.msra.mxu0 %v440
      %461 = vmatprep.subr.bf16.mxu0 0
      %462 = vmatpush2.bf16.msra.mxu0 0
      %463 = vmatprep.subr.bf16.mxu0 0
      %464 = vmatpush2.bf16.msra.mxu0 0
      %465 = vmatprep.subr.bf16.mxu0 0
      %466 = vmatpush2.bf16.msra.mxu0 0
      %467 = vmatprep.subr.bf16.mxu0 0
      %468 = vmatpush2.bf16.msra.mxu0 0
      %469 = vmatprep.subr.bf16.mxu0 0
      %470 = vmatpush2.bf16.msra.mxu0 0
      %471 = vmatprep.subr.bf16.mxu0 0
      %472 = vmatpush2.bf16.msra.mxu0 0
      %473 = vmatprep.subr.bf16.mxu0 0
      %474 = vmatpush2.bf16.msra.mxu0 0
      %475 = vmatprep.subr.bf16.mxu0 0
      %476 = vmatpush2.bf16.msra.mxu0 0
      %477 = vmatprep.mubr.bf16.mxu0 0
      %478 = vmatmul.mubr.bf16.gmra.mxu0 %v436
      %v479 = vpop.f32.mrf.mxu0
      %v480 = vadd.f32 %v432, %v479
      %v481 = vpop.f32.mrf.mxu0
      %v482 = vadd.f32 %v432, %v481
      %v483 = vpop.f32.mrf.mxu0
      %v484 = vpop.f32.mrf.mxu0
      %485 = vdwg.mxu0
      %v488 = vcombine.low %v480, %v482
      %v490 = vunpack.c.l.s4 1983009808
      %v491 = vunpack.c.0.s8 %v490
      %v492 = vlaneseq
      %v493 = vshrl.u32 %v492, 7
      %v494 = vsub.s32 %v491, %v493
      %v495 = vrot.slane %v488, %v494
      %497 = vst [vmem:[%s397] sm:$0xf] %v495
      %v498 = vld [vmem:[%s3] sm:$0x3]
      %v499 = vpack.c.bf16 %v498, %v498
      %v500 = vld [vmem:[%s4] sm:$0x3]
      %502 = vset.pattern.permute.xlu0 0
      %503 = vperm.xlu0 %502, %v500
      %v504 = vpop.permute.xlu0 %503
      %v507 = vsel %vm434, %v499, 0
      %509 = vmatprep.subr.bf16.mxu0 0
      %510 = vmatpush1.bf16.msra.mxu0 0
      %511 = vmatprep.subr.bf16.mxu0 0
      %512 = vmatpush1.bf16.msra.mxu0 0
      %513 = vmatprep.subr.bf16.mxu0 0
      %514 = vmatpush1.bf16.msra.mxu0 0
      %515 = vmatprep.subr.bf16.mxu0 0
      %516 = vmatpush1.bf16.msra.mxu0 0
      %517 = vmatprep.subr.bf16.mxu0 0
      %518 = vmatpush1.bf16.msra.mxu0 0
      %519 = vmatprep.subr.bf16.mxu0 0
      %520 = vmatpush1.bf16.msra.mxu0 0
      %521 = vmatprep.subr.bf16.mxu0 0
      %522 = vmatpush1.bf16.msra.mxu0 0
      %523 = vmatprep.subr.bf16.mxu0 %v443
      %524 = vmatpush1.bf16.msra.mxu0 %v440
      %525 = vmatprep.subr.bf16.mxu0 0
      %526 = vmatpush2.bf16.msra.mxu0 0
      %527 = vmatprep.subr.bf16.mxu0 0
      %528 = vmatpush2.bf16.msra.mxu0 0
      %529 = vmatprep.subr.bf16.mxu0 0
      %530 = vmatpush2.bf16.msra.mxu0 0
      %531 = vmatprep.subr.bf16.mxu0 0
      %532 = vmatpush2.bf16.msra.mxu0 0
      %533 = vmatprep.subr.bf16.mxu0 0
      %534 = vmatpush2.bf16.msra.mxu0 0
      %535 = vmatprep.subr.bf16.mxu0 0
      %536 = vmatpush2.bf16.msra.mxu0 0
      %537 = vmatprep.subr.bf16.mxu0 0
      %538 = vmatpush2.bf16.msra.mxu0 0
      %539 = vmatprep.subr.bf16.mxu0 0
      %540 = vmatpush2.bf16.msra.mxu0 0
      %541 = vmatprep.mubr.bf16.mxu0 0
      %542 = vmatmul.mubr.bf16.gmra.mxu0 %v507
      %v543 = vpop.f32.mrf.mxu0
      %v544 = vadd.f32 %v504, %v543
      %v545 = vpop.f32.mrf.mxu0
      %v546 = vadd.f32 %v504, %v545
      %v547 = vpop.f32.mrf.mxu0
      %v548 = vpop.f32.mrf.mxu0
      %549 = vdwg.mxu0
      %v552 = vcombine.low %v544, %v546
      %v554 = vunpack.c.l.s4 1983009808
      %v555 = vunpack.c.0.s8 %v554
      %v556 = vlaneseq
      %v557 = vshrl.u32 %v556, 7
      %v558 = vsub.s32 %v555, %v557
      %v559 = vrot.slane %v552, %v558
      %561 = vst [vmem:[%s407] sm:$0xf] %v559
      %v562 = vld [vmem:[%s5] sm:$0x3]
      %v563 = vpack.c.bf16 %v562, %v562
      %v564 = vld [vmem:[%s6] sm:$0x3]
      %566 = vset.pattern.permute.xlu0 0
      %567 = vperm.xlu0 %566, %v564
      %v568 = vpop.permute.xlu0 %567
      %v571 = vsel %vm434, %v563, 0
      %573 = vmatprep.subr.bf16.mxu0 0
      %574 = vmatpush1.bf16.msra.mxu0 0
      %575 = vmatprep.subr.bf16.mxu0 0
      %576 = vmatpush1.bf16.msra.mxu0 0
      %577 = vmatprep.subr.bf16.mxu0 0
      %578 = vmatpush1.bf16.msra.mxu0 0
      %579 = vmatprep.subr.bf16.mxu0 0
      %580 = vmatpush1.bf16.msra.mxu0 0
      %581 = vmatprep.subr.bf16.mxu0 0
      %582 = vmatpush1.bf16.msra.mxu0 0
      %583 = vmatprep.subr.bf16.mxu0 0
      %584 = vmatpush1.bf16.msra.mxu0 0
      %585 = vmatprep.subr.bf16.mxu0 0
      %586 = vmatpush1.bf16.msra.mxu0 0
      %587 = vmatprep.subr.bf16.mxu0 %v443
      %588 = vmatpush1.bf16.msra.mxu0 %v440
      %589 = vmatprep.subr.bf16.mxu0 0
      %590 = vmatpush2.bf16.msra.mxu0 0
      %591 = vmatprep.subr.bf16.mxu0 0
      %592 = vmatpush2.bf16.msra.mxu0 0
      %593 = vmatprep.subr.bf16.mxu0 0
      %594 = vmatpush2.bf16.msra.mxu0 0
      %595 = vmatprep.subr.bf16.mxu0 0
      %596 = vmatpush2.bf16.msra.mxu0 0
      %597 = vmatprep.subr.bf16.mxu0 0
      %598 = vmatpush2.bf16.msra.mxu0 0
      %599 = vmatprep.subr.bf16.mxu0 0
      %600 = vmatpush2.bf16.msra.mxu0 0
      %601 = vmatprep.subr.bf16.mxu0 0
      %602 = vmatpush2.bf16.msra.mxu0 0
      %603 = vmatprep.subr.bf16.mxu0 0
      %604 = vmatpush2.bf16.msra.mxu0 0
      %605 = vmatprep.mubr.bf16.mxu0 0
      %606 = vmatmul.mubr.bf16.gmra.mxu0 %v571
      %v607 = vpop.f32.mrf.mxu0
      %v608 = vadd.f32 %v568, %v607
      %v609 = vpop.f32.mrf.mxu0
      %v610 = vadd.f32 %v568, %v609
      %v611 = vpop.f32.mrf.mxu0
      %v612 = vpop.f32.mrf.mxu0
      %613 = vdwg.mxu0
      %v616 = vcombine.low %v608, %v610
      %v618 = vunpack.c.l.s4 1983009808
      %v619 = vunpack.c.0.s8 %v618
      %v620 = vlaneseq
      %v621 = vshrl.u32 %v620, 7
      %v622 = vsub.s32 %v619, %v621
      %v623 = vrot.slane %v616, %v622
      %625 = vst [vmem:[%s417] sm:$0xf] %v623
      %s626 = smul.u32 2, %s26
      %p627 = scmp.lt.s32.totalorder %s25, 1
      %s628 = scalar_select %p627, %s25, 1
      %p629 = scmp.lt.s32.totalorder %s626, 1
      %s630 = scalar_select %p629, %s626, 1
      %s631 = smul.addr %s628, 2
      %s632 = sadd.s32 %s630, %s631
      %s633 = smul.addr %s632, 2
      %s634 = scalar_lea.vmem %s7, %s633
      %s635 = smul.u32 2, %s26
      %p636 = scmp.lt.s32.totalorder %s25, 1
      %s637 = scalar_select %p636, %s25, 1
      %p638 = scmp.lt.s32.totalorder %s635, 1
      %s639 = scalar_select %p638, %s635, 1
      %s640 = smul.addr %s637, 2
      %s641 = sadd.s32 %s639, %s640
      %s642 = smul.addr %s641, 2
      %s643 = scalar_lea.vmem %s8, %s642
      %s644 = smul.u32 2, %s26
      %p645 = scmp.lt.s32.totalorder %s25, 1
      %s646 = scalar_select %p645, %s25, 1
      %p647 = scmp.lt.s32.totalorder %s644, 1
      %s648 = scalar_select %p647, %s644, 1
      %s649 = smul.addr %s646, 2
      %s650 = sadd.s32 %s648, %s649
      %s651 = smul.addr %s650, 2
      %s652 = scalar_lea.vmem %s9, %s651
      // Predicated region
      $region49: #{non_local_block.2} parent=47 // pred_check
        %p653 = pneg %p207
      $region50: #{non_local_block.2} parent=47 // pred_check_branch
        %655 = sbr.rel (%p653) target = $region52
      $region51: #{non_local_block.2} parent=47 // pred_region
        %s656 = smul.u32 2, %s26
      $region52: #{non_local_block.2} parent=47 // pred_fallthru
        _
      // Predicated region
      $region53: #{non_local_block.2} parent=47 // pred_check
        %p657 = pneg %p235
      $region54: #{non_local_block.2} parent=47 // pred_check_branch
        %659 = sbr.rel (%p657) target = $region56
      $region55: #{non_local_block.2} parent=47 // pred_region
        %s660 = smul.u32 2, %s26
      $region56: #{non_local_block.2} parent=47 // pred_fallthru
        _
      // Predicated region
      $region57: #{non_local_block.2} parent=47 // pred_check
        %p661 = pneg %p263
      $region58: #{non_local_block.2} parent=47 // pred_check_branch
        %663 = sbr.rel (%p661) target = $region60
      $region59: #{non_local_block.2} parent=47 // pred_region
        %s664 = smul.u32 2, %s26
      $region60: #{non_local_block.2} parent=47 // pred_fallthru
        _
    $region48: #{non_local_block.2} parent=5 // pred_fallthru
      _
    %p665 = scmp.le.s32.totalorder 2, %s16
    // Predicated region
    $region61: #{non_local_block.2} parent=5 // pred_check
      %p666 = pneg %p665
    $region62: #{non_local_block.2} parent=5 // pred_check_branch
      %668 = sbr.rel (%p666) target = $region64
    $region63: #{non_local_block.2} parent=5 // pred_region
      %s669 = ssub.s32 %s16, 2
      // Predicated region
      $region65: #{non_local_block.2} parent=63 // pred_check
        %p670 = pneg %p213
      $region66: #{non_local_block.2} parent=63 // pred_check_branch
        %672 = sbr.rel (%p670) target = $region68
      $region67: #{non_local_block.2} parent=63 // pred_region
        %s673 = smul.u32 2, %s28
        %p674 = scmp.lt.s32.totalorder %s27, 1
        %s675 = scalar_select %p674, %s27, 1
        %p676 = scmp.lt.s32.totalorder %s673, 1
        %s677 = scalar_select %p676, %s673, 1
        %s678 = smul.addr %s675, 2
        %s679 = sadd.s32 %s677, %s678
        %s680 = smul.addr %s679, 2
        %s681 = scalar_lea.vmem %s7, %s680
      $region68: #{non_local_block.2} parent=63 // pred_fallthru
        _
      // Predicated region
      $region69: #{non_local_block.2} parent=63 // pred_check
        %p682 = pneg %p241
      $region70: #{non_local_block.2} parent=63 // pred_check_branch
        %684 = sbr.rel (%p682) target = $region72
      $region71: #{non_local_block.2} parent=63 // pred_region
        %s685 = smul.u32 2, %s28
        %p686 = scmp.lt.s32.totalorder %s27, 1
        %s687 = scalar_select %p686, %s27, 1
        %p688 = scmp.lt.s32.totalorder %s685, 1
        %s689 = scalar_select %p688, %s685, 1
        %s690 = smul.addr %s687, 2
        %s691 = sadd.s32 %s689, %s690
        %s692 = smul.addr %s691, 2
        %s693 = scalar_lea.vmem %s8, %s692
      $region72: #{non_local_block.2} parent=63 // pred_fallthru
        _
      // Predicated region
      $region73: #{non_local_block.2} parent=63 // pred_check
        %p694 = pneg %p269
      $region74: #{non_local_block.2} parent=63 // pred_check_branch
        %696 = sbr.rel (%p694) target = $region76
      $region75: #{non_local_block.2} parent=63 // pred_region
        %s697 = smul.u32 2, %s28
        %p698 = scmp.lt.s32.totalorder %s27, 1
        %s699 = scalar_select %p698, %s27, 1
        %p700 = scmp.lt.s32.totalorder %s697, 1
        %s701 = scalar_select %p700, %s697, 1
        %s702 = smul.addr %s699, 2
        %s703 = sadd.s32 %s701, %s702
        %s704 = smul.addr %s703, 2
        %s705 = scalar_lea.vmem %s9, %s704
      $region76: #{non_local_block.2} parent=63 // pred_fallthru
        _
    $region64: #{non_local_block.2} parent=5 // pred_fallthru
      _
  $region6: #{non_local_block.2} parent=0 // loop_footer
    %s20 = sadd.s32 1, %s16
  $region7: #{non_local_block.2} parent=0 // loop_footer_branch
    %15 = sbr.rel target = $region3
  $region8: #{non_local_block.2} parent=0 // loop_exit
    _

// kernel: non_local_block.3
$region0: #{non_local_block.3}
  #allocation0 [shape = 'u32[]', space=smem, size = 0x4, offset = 0x4, fixed_abs, tag = 'smem constant byte address 0x4 - core index']
  #allocation1 [shape = 'u32[144,128]{1,0:T(1,128)}', space=vmem, size = 0x12000, scoped, tag = 'internal scratch']
  #allocation2 [shape = 'f32[256,2]{1,0:T(8,128)}', space=vmem, size = 0x20000, scoped, tag = 'scratch operand']
  %s0 = inlined_call_operand.vmem [shape: f32[2,256,2], index: 0, kind: input, shape index: {}]
  %s1 = inlined_call_operand.vmem [shape: f32[2,2,256], index: 1, kind: input, shape index: {}]
  %s2 = inlined_call_operand.vmem [shape: f32[2,256,2], index: 2, kind: input, shape index: {}]
  %s3 = inlined_call_operand.vmem [shape: f32[2,4,256], index: 3, kind: input, shape index: {}]
  %s4 = inlined_call_operand.vmem [shape: f32[4,2], index: 4, kind: input, shape index: {}]
  %s5 = inlined_call_operand.vmem [shape: f32[4,1], index: 5, kind: input, shape index: {}]
  %s6 = inlined_call_operand.vmem [shape: f32[2,4,256], index: 6, kind: output, shape index: {}]
  %s7 = sld [smem:[#allocation0]]
  $region65: #{non_local_block.3} parent=0
    _
  %s9 = ssub.s32 1, %s7
  %s10 = scalar_select 0, %s9, %s7
  loop: start=0, step=1, limit=4
  $region2: #{non_local_block.3} parent=0 // loop_pre_header
    _
  $region3: #{non_local_block.3} parent=0 // loop_header
    %s12 = sphi 0, %s16
    %p13 = scmp.ge.s32.totalorder %s12, 4
    %s19 = sphi 0, %s31
    %s20 = sphi 0, %s27
    %s21 = sphi 0, %s19
    %s22 = sphi 0, %s20
    %s23 = sphi 0, %s21
    %s24 = sphi 0, %s22
    %s34 = sphi 0, %s36
    %s37 = sphi 0, %s34
    %s38 = sphi 0, %s37
    %s54 = sphi 0, %s38
    %s62 = sphi 0, %s64
    %s65 = sphi 0, %s62
    %s66 = sphi 0, %s65
    %s82 = sphi 0, %s66
    %s90 = sphi 0, %s92
    %s93 = sphi 0, %s90
    %s94 = sphi 0, %s93
    %s110 = sphi 0, %s94
    %s116 = sphi 0, %s118
    %s119 = sphi 0, %s116
    %s120 = sphi 0, %s119
    %s136 = sphi 0, %s120
    %s140 = sphi 0, %s140
    %s142 = sphi 0, %s140
    %s143 = sphi 0, %s142
    %s157 = sphi 0, %s143
    %s161 = sphi 0, %s161
    %s163 = sphi 0, %s161
    %s164 = sphi 0, %s163
    %s178 = sphi 0, %s164
    %s184 = sphi 0, %s186
    %s187 = sphi 0, %s184
    %s188 = sphi 0, %s187
    %s204 = sphi 0, %s188
  $region4: #{non_local_block.3} parent=0 // loop_header_branch
    %15 = sbr.rel (%p13) target = $region8
  $region5: #{non_local_block.3} parent=0 // loop_body
    %s17 = ssub.s32 %s12, 1
    %s18 = ssub.s32 %s12, 2
    %s25 = sadd.s32 1, %s20
    %p26 = scmp.ge.s32.totalorder %s25, 1
    %s27 = scalar_select %p26, 0, %s25
    %s28 = sadd.s32 1, %s19
    %s29 = scalar_select %p26, %s28, %s19
    %p30 = scmp.ge.s32.totalorder %s29, 2
    %s31 = scalar_select %p30, 0, %s29
    %s32 = ssub.s32 %s19, %s31
    %p33 = scmp.eq.s32.totalorder %s32, 0
    %s35 = sadd.s32 %s34, 1
    %s36 = scalar_select %p33, %s34, %s35
    %p39 = pneg %p33
    %p40 = scmp.eq.s32.totalorder %s12, 1
    %p41 = por %p39, %p40
    %p42 = scmp.ne.s32.totalorder %s34, %s37
    %p43 = scmp.eq.s32.totalorder %s12, 0
    %p44 = por %p42, %p43
    %p45 = scmp.ne.s32.totalorder %s34, %s37
    %p46 = scmp.eq.s32.totalorder %s17, 1
    %p47 = por %p45, %p46
    %p48 = scmp.ne.s32.totalorder %s37, %s38
    %p49 = scmp.eq.s32.totalorder %s17, 0
    %p50 = por %p48, %p49
    %p51 = scmp.ne.s32.totalorder %s37, %s38
    %p52 = scmp.eq.s32.totalorder %s18, 1
    %p53 = por %p51, %p52
    %p55 = scmp.ne.s32.totalorder %s38, %s54
    %p56 = scmp.eq.s32.totalorder %s18, 0
    %p57 = por %p55, %p56
    %s58 = ssub.s32 %s19, %s31
    %s59 = ssub.s32 %s20, %s27
    %s60 = sor.u32 %s58, %s59
    %p61 = scmp.eq.s32.totalorder %s60, 0
    %s63 = sadd.s32 %s62, 1
    %s64 = scalar_select %p61, %s62, %s63
    %p67 = pneg %p61
    %p68 = scmp.eq.s32.totalorder %s12, 1
    %p69 = por %p67, %p68
    %p70 = scmp.ne.s32.totalorder %s62, %s65
    %p71 = scmp.eq.s32.totalorder %s12, 0
    %p72 = por %p70, %p71
    %p73 = scmp.ne.s32.totalorder %s62, %s65
    %p74 = scmp.eq.s32.totalorder %s17, 1
    %p75 = por %p73, %p74
    %p76 = scmp.ne.s32.totalorder %s65, %s66
    %p77 = scmp.eq.s32.totalorder %s17, 0
    %p78 = por %p76, %p77
    %p79 = scmp.ne.s32.totalorder %s65, %s66
    %p80 = scmp.eq.s32.totalorder %s18, 1
    %p81 = por %p79, %p80
    %p83 = scmp.ne.s32.totalorder %s66, %s82
    %p84 = scmp.eq.s32.totalorder %s18, 0
    %p85 = por %p83, %p84
    %s86 = ssub.s32 %s19, %s31
    %s87 = ssub.s32 %s20, %s27
    %s88 = sor.u32 %s86, %s87
    %p89 = scmp.eq.s32.totalorder %s88, 0
    %s91 = sadd.s32 %s90, 1
    %s92 = scalar_select %p89, %s90, %s91
    %p95 = pneg %p89
    %p96 = scmp.eq.s32.totalorder %s12, 1
    %p97 = por %p95, %p96
    %p98 = scmp.ne.s32.totalorder %s90, %s93
    %p99 = scmp.eq.s32.totalorder %s12, 0
    %p100 = por %p98, %p99
    %p101 = scmp.ne.s32.totalorder %s90, %s93
    %p102 = scmp.eq.s32.totalorder %s17, 1
    %p103 = por %p101, %p102
    %p104 = scmp.ne.s32.totalorder %s93, %s94
    %p105 = scmp.eq.s32.totalorder %s17, 0
    %p106 = por %p104, %p105
    %p107 = scmp.ne.s32.totalorder %s93, %s94
    %p108 = scmp.eq.s32.totalorder %s18, 1
    %p109 = por %p107, %p108
    %p111 = scmp.ne.s32.totalorder %s94, %s110
    %p112 = scmp.eq.s32.totalorder %s18, 0
    %p113 = por %p111, %p112
    %s114 = ssub.s32 %s19, %s31
    %p115 = scmp.eq.s32.totalorder %s114, 0
    %s117 = sadd.s32 %s116, 1
    %s118 = scalar_select %p115, %s116, %s117
    %p121 = pneg %p115
    %p122 = scmp.eq.s32.totalorder %s12, 1
    %p123 = por %p121, %p122
    %p124 = scmp.ne.s32.totalorder %s116, %s119
    %p125 = scmp.eq.s32.totalorder %s12, 0
    %p126 = por %p124, %p125
    %p127 = scmp.ne.s32.totalorder %s116, %s119
    %p128 = scmp.eq.s32.totalorder %s17, 1
    %p129 = por %p127, %p128
    %p130 = scmp.ne.s32.totalorder %s119, %s120
    %p131 = scmp.eq.s32.totalorder %s17, 0
    %p132 = por %p130, %p131
    %p133 = scmp.ne.s32.totalorder %s119, %s120
    %p134 = scmp.eq.s32.totalorder %s18, 1
    %p135 = por %p133, %p134
    %p137 = scmp.ne.s32.totalorder %s120, %s136
    %p138 = scmp.eq.s32.totalorder %s18, 0
    %p139 = por %p137, %p138
    %s141 = sadd.s32 %s140, 1
    %p144 = scmp.eq.s32.totalorder %s12, 1
    %p145 = scmp.ne.s32.totalorder %s140, %s142
    %p146 = scmp.eq.s32.totalorder %s12, 0
    %p147 = por %p145, %p146
    %p148 = scmp.ne.s32.totalorder %s140, %s142
    %p149 = scmp.eq.s32.totalorder %s17, 1
    %p150 = por %p148, %p149
    %p151 = scmp.ne.s32.totalorder %s142, %s143
    %p152 = scmp.eq.s32.totalorder %s17, 0
    %p153 = por %p151, %p152
    %p154 = scmp.ne.s32.totalorder %s142, %s143
    %p155 = scmp.eq.s32.totalorder %s18, 1
    %p156 = por %p154, %p155
    %p158 = scmp.ne.s32.totalorder %s143, %s157
    %p159 = scmp.eq.s32.totalorder %s18, 0
    %p160 = por %p158, %p159
    %s162 = sadd.s32 %s161, 1
    %p165 = scmp.eq.s32.totalorder %s12, 1
    %p166 = scmp.ne.s32.totalorder %s161, %s163
    %p167 = scmp.eq.s32.totalorder %s12, 0
    %p168 = por %p166, %p167
    %p169 = scmp.ne.s32.totalorder %s161, %s163
    %p170 = scmp.eq.s32.totalorder %s17, 1
    %p171 = por %p169, %p170
    %p172 = scmp.ne.s32.totalorder %s163, %s164
    %p173 = scmp.eq.s32.totalorder %s17, 0
    %p174 = por %p172, %p173
    %p175 = scmp.ne.s32.totalorder %s163, %s164
    %p176 = scmp.eq.s32.totalorder %s18, 1
    %p177 = por %p175, %p176
    %p179 = scmp.ne.s32.totalorder %s164, %s178
    %p180 = scmp.eq.s32.totalorder %s18, 0
    %p181 = por %p179, %p180
    %s182 = ssub.s32 %s19, %s31
    %p183 = scmp.eq.s32.totalorder %s182, 0
    %s185 = sadd.s32 %s184, 1
    %s186 = scalar_select %p183, %s184, %s185
    %p189 = pneg %p183
    %p190 = scmp.eq.s32.totalorder %s12, 1
    %p191 = por %p189, %p190
    %p192 = scmp.ne.s32.totalorder %s184, %s187
    %p193 = scmp.eq.s32.totalorder %s12, 0
    %p194 = por %p192, %p193
    %p195 = scmp.ne.s32.totalorder %s184, %s187
    %p196 = scmp.eq.s32.totalorder %s17, 1
    %p197 = por %p195, %p196
    %p198 = scmp.ne.s32.totalorder %s187, %s188
    %p199 = scmp.eq.s32.totalorder %s17, 0
    %p200 = por %p198, %p199
    %p201 = scmp.ne.s32.totalorder %s187, %s188
    %p202 = scmp.eq.s32.totalorder %s18, 1
    %p203 = por %p201, %p202
    %p205 = scmp.ne.s32.totalorder %s188, %s204
    %p206 = scmp.eq.s32.totalorder %s18, 0
    %p207 = por %p205, %p206
    %p208 = scmp.le.s32.totalorder 1, %s12
    %p209 = scmp.lt.s32.totalorder %s12, 3
    %p210 = pnand %p208, %p209
    %p211 = pneg %p210
    // Predicated region
    $region9: #{non_local_block.3} parent=5 // pred_check
      _
    $region10: #{non_local_block.3} parent=5 // pred_check_branch
      %213 = sbr.rel (%p210) target = $region12
    $region11: #{non_local_block.3} parent=5 // pred_region
      %s214 = ssub.s32 %s12, 1
      // Predicated region
      $region13: #{non_local_block.3} parent=11 // pred_check
        %p215 = pneg %p153
      $region14: #{non_local_block.3} parent=11 // pred_check_branch
        %217 = sbr.rel (%p215) target = $region16
      $region15: #{non_local_block.3} parent=11 // pred_region
        _
      $region16: #{non_local_block.3} parent=11 // pred_fallthru
        _
      // Predicated region
      $region17: #{non_local_block.3} parent=11 // pred_check
        %p218 = pneg %p174
      $region18: #{non_local_block.3} parent=11 // pred_check_branch
        %220 = sbr.rel (%p218) target = $region20
      $region19: #{non_local_block.3} parent=11 // pred_region
        _
      $region20: #{non_local_block.3} parent=11 // pred_fallthru
        _
    $region12: #{non_local_block.3} parent=5 // pred_fallthru
      _
    %p221 = scmp.lt.s32.totalorder %s12, 2
    // Predicated region
    $region21: #{non_local_block.3} parent=5 // pred_check
      %p222 = pneg %p221
    $region22: #{non_local_block.3} parent=5 // pred_check_branch
      %224 = sbr.rel (%p222) target = $region24
    $region23: #{non_local_block.3} parent=5 // pred_region
      // Predicated region
      $region25: #{non_local_block.3} parent=23 // pred_check
        %p225 = pneg %p44
      $region26: #{non_local_block.3} parent=23 // pred_check_branch
        %227 = sbr.rel (%p225) target = $region28
      $region27: #{non_local_block.3} parent=23 // pred_region
        %p228 = scmp.lt.s32.totalorder %s19, 1
        %s229 = scalar_select %p228, %s19, 1
        %s230 = smul.addr %s229, 32
        %s231 = smul.addr %s230, 8
        %s232 = scalar_lea.vmem %s0, %s231
      $region28: #{non_local_block.3} parent=23 // pred_fallthru
        _
      // Predicated region
      $region29: #{non_local_block.3} parent=23 // pred_check
        %p233 = pneg %p72
      $region30: #{non_local_block.3} parent=23 // pred_check_branch
        %235 = sbr.rel (%p233) target = $region32
      $region31: #{non_local_block.3} parent=23 // pred_region
        %s236 = smul.u32 2, %s20
        %p237 = scmp.lt.s32.totalorder %s19, 1
        %s238 = scalar_select %p237, %s19, 1
        %p239 = scmp.lt.s32.totalorder %s236, 1
        %s240 = scalar_select %p239, %s236, 1
        %s241 = smul.addr %s238, 2
        %s242 = sadd.s32 %s240, %s241
        %s243 = smul.addr %s242, 2
        %s244 = scalar_lea.vmem %s1, %s243
        %s245 = smul.u32 2, %s20
      $region32: #{non_local_block.3} parent=23 // pred_fallthru
        _
      // Predicated region
      $region33: #{non_local_block.3} parent=23 // pred_check
        %p246 = pneg %p100
      $region34: #{non_local_block.3} parent=23 // pred_check_branch
        %248 = sbr.rel (%p246) target = $region36
      $region35: #{non_local_block.3} parent=23 // pred_region
        %s249 = smul.u32 32, %s20
        %p250 = scmp.lt.s32.totalorder %s19, 1
        %s251 = scalar_select %p250, %s19, 1
        %p252 = scmp.lt.s32.totalorder %s249, 31
        %s253 = scalar_select %p252, %s249, 31
        %s254 = smul.addr %s251, 32
        %s255 = sadd.s32 %s253, %s254
        %s256 = smul.addr %s255, 8
        %s257 = scalar_lea.vmem %s2, %s256
        %s258 = smul.u32 32, %s20
      $region36: #{non_local_block.3} parent=23 // pred_fallthru
        _
      // Predicated region
      $region37: #{non_local_block.3} parent=23 // pred_check
        %p259 = pneg %p126
      $region38: #{non_local_block.3} parent=23 // pred_check_branch
        %261 = sbr.rel (%p259) target = $region40
      $region39: #{non_local_block.3} parent=23 // pred_region
        %p262 = scmp.lt.s32.totalorder %s19, 1
        %s263 = scalar_select %p262, %s19, 1
        %s264 = smul.addr %s263, 2
        %s265 = smul.addr %s264, 4
        %s266 = scalar_lea.vmem %s3, %s265
      $region40: #{non_local_block.3} parent=23 // pred_fallthru
        _
    $region24: #{non_local_block.3} parent=5 // pred_fallthru
      _
    %p267 = scmp.le.s32.totalorder 1, %s12
    %p268 = scmp.lt.s32.totalorder %s12, 3
    %p269 = pnand %p267, %p268
    %p270 = pneg %p269
    // Predicated region
    $region41: #{non_local_block.3} parent=5 // pred_check
      _
    $region42: #{non_local_block.3} parent=5 // pred_check_branch
      %272 = sbr.rel (%p269) target = $region44
    $region43: #{non_local_block.3} parent=5 // pred_region
      %s273 = ssub.s32 %s12, 1
      %p274 = scmp.lt.s32.totalorder %s21, 1
      %s275 = scalar_select %p274, %s21, 1
      %s276 = smul.addr %s275, 32
      %s277 = smul.addr %s276, 8
      %s278 = scalar_lea.vmem %s0, %s277
      %p279 = pneg %p50
      %p280 = pneg %p47
      %s281 = smul.u32 2, %s22
      %p282 = scmp.lt.s32.totalorder %s21, 1
      %s283 = scalar_select %p282, %s21, 1
      %p284 = scmp.lt.s32.totalorder %s281, 1
      %s285 = scalar_select %p284, %s281, 1
      %s286 = smul.addr %s283, 2
      %s287 = sadd.s32 %s285, %s286
      %s288 = smul.addr %s287, 2
      %s289 = scalar_lea.vmem %s1, %s288
      %p290 = pneg %p78
      %p291 = pneg %p75
      %s292 = smul.u32 32, %s22
      %p293 = scmp.lt.s32.totalorder %s21, 1
      %s294 = scalar_select %p293, %s21, 1
      %p295 = scmp.lt.s32.totalorder %s292, 31
      %s296 = scalar_select %p295, %s292, 31
      %s297 = smul.addr %s294, 32
      %s298 = sadd.s32 %s296, %s297
      %s299 = smul.addr %s298, 8
      %s300 = scalar_lea.vmem %s2, %s299
      %p301 = pneg %p106
      %p302 = pneg %p103
      %p303 = scmp.lt.s32.totalorder %s21, 1
      %s304 = scalar_select %p303, %s21, 1
      %s305 = smul.addr %s304, 2
      %s306 = smul.addr %s305, 4
      %s307 = scalar_lea.vmem %s3, %s306
      %p308 = pneg %p132
      %p309 = pneg %p129
      %p310 = pneg %p153
      %p311 = pneg %p150
      %p312 = pneg %p174
      %p313 = pneg %p171
      %p314 = pneg %p200
      %p315 = pneg %p197
      %p316 = scmp.lt.s32.totalorder %s21, 1
      %s317 = scalar_select %p316, %s21, 1
      %s318 = smul.addr %s317, 2
      %s319 = smul.addr %s318, 4
      %s320 = scalar_lea.vmem %s6, %s319
      %p321 = scmp.lt.s32.totalorder %s21, 1
      %s322 = scalar_select %p321, %s21, 1
      %s323 = smul.addr %s322, 32
      %s324 = smul.addr %s323, 8
      %s325 = scalar_lea.vmem %s0, %s324
      %s326 = smul.u32 2, %s22
      %p327 = scmp.lt.s32.totalorder %s21, 1
      %s328 = scalar_select %p327, %s21, 1
      %p329 = scmp.lt.s32.totalorder %s326, 1
      %s330 = scalar_select %p329, %s326, 1
      %s331 = smul.addr %s328, 2
      %s332 = sadd.s32 %s330, %s331
      %s333 = smul.addr %s332, 2
      %s334 = scalar_lea.vmem %s1, %s333
      %s335 = smul.u32 2, %s22
      %s336 = smul.u32 32, %s22
      %p337 = scmp.lt.s32.totalorder %s21, 1
      %s338 = scalar_select %p337, %s21, 1
      %p339 = scmp.lt.s32.totalorder %s336, 31
      %s340 = scalar_select %p339, %s336, 31
      %s341 = smul.addr %s338, 32
      %s342 = sadd.s32 %s340, %s341
      %s343 = smul.addr %s342, 8
      %s344 = scalar_lea.vmem %s2, %s343
      %s345 = smul.u32 32, %s22
      %p346 = scmp.lt.s32.totalorder %s21, 1
      %s347 = scalar_select %p346, %s21, 1
      %s348 = smul.addr %s347, 2
      %s349 = smul.addr %s348, 4
      %s350 = scalar_lea.vmem %s3, %s349
      %p351 = scmp.lt.s32.totalorder %s21, 1
      %s352 = scalar_select %p351, %s21, 1
      %s353 = smul.addr %s352, 2
      %s354 = smul.addr %s353, 4
      %s355 = scalar_lea.vmem %s6, %s354
      %p357 = scmp.eq.s32.totalorder %s22, 0
      // Predicated region
      $region45: #{non_local_block.3} parent=43 // pred_check
        %p358 = pneg %p357
      $region46: #{non_local_block.3} parent=43 // pred_check_branch
        %360 = sbr.rel (%p358) target = $region48
      $region47: #{non_local_block.3} parent=43 // pred_region
        %vm361 = vcmask 15360
        %362 = vst.msk [vmem:[#allocation2] sm:$0xff] %vm361, 0.0
        %363 = vst.msk [vmem:[#allocation2 + $0x8] sm:$0xff] %vm361, 0.0
        %364 = vst.msk [vmem:[#allocation2 + $0x10] sm:$0xff] %vm361, 0.0
        %365 = vst.msk [vmem:[#allocation2 + $0x18] sm:$0xff] %vm361, 0.0
        %366 = vst.msk [vmem:[#allocation2 + $0x20] sm:$0xff] %vm361, 0.0
        %367 = vst.msk [vmem:[#allocation2 + $0x28] sm:$0xff] %vm361, 0.0
        %368 = vst.msk [vmem:[#allocation2 + $0x30] sm:$0xff] %vm361, 0.0
        %369 = vst.msk [vmem:[#allocation2 + $0x38] sm:$0xff] %vm361, 0.0
        %370 = vst.msk [vmem:[#allocation2 + $0x40] sm:$0xff] %vm361, 0.0
        %371 = vst.msk [vmem:[#allocation2 + $0x48] sm:$0xff] %vm361, 0.0
        %372 = vst.msk [vmem:[#allocation2 + $0x50] sm:$0xff] %vm361, 0.0
        %373 = vst.msk [vmem:[#allocation2 + $0x58] sm:$0xff] %vm361, 0.0
        %374 = vst.msk [vmem:[#allocation2 + $0x60] sm:$0xff] %vm361, 0.0
        %375 = vst.msk [vmem:[#allocation2 + $0x68] sm:$0xff] %vm361, 0.0
        %376 = vst.msk [vmem:[#allocation2 + $0x70] sm:$0xff] %vm361, 0.0
        %377 = vst.msk [vmem:[#allocation2 + $0x78] sm:$0xff] %vm361, 0.0
        %378 = vst.msk [vmem:[#allocation2 + $0x80] sm:$0xff] %vm361, 0.0
        %379 = vst.msk [vmem:[#allocation2 + $0x88] sm:$0xff] %vm361, 0.0
        %380 = vst.msk [vmem:[#allocation2 + $0x90] sm:$0xff] %vm361, 0.0
        %381 = vst.msk [vmem:[#allocation2 + $0x98] sm:$0xff] %vm361, 0.0
        %382 = vst.msk [vmem:[#allocation2 + $0xa0] sm:$0xff] %vm361, 0.0
        %383 = vst.msk [vmem:[#allocation2 + $0xa8] sm:$0xff] %vm361, 0.0
        %384 = vst.msk [vmem:[#allocation2 + $0xb0] sm:$0xff] %vm361, 0.0
        %385 = vst.msk [vmem:[#allocation2 + $0xb8] sm:$0xff] %vm361, 0.0
        %386 = vst.msk [vmem:[#allocation2 + $0xc0] sm:$0xff] %vm361, 0.0
        %387 = vst.msk [vmem:[#allocation2 + $0xc8] sm:$0xff] %vm361, 0.0
        %388 = vst.msk [vmem:[#allocation2 + $0xd0] sm:$0xff] %vm361, 0.0
        %389 = vst.msk [vmem:[#allocation2 + $0xd8] sm:$0xff] %vm361, 0.0
        %390 = vst.msk [vmem:[#allocation2 + $0xe0] sm:$0xff] %vm361, 0.0
        %391 = vst.msk [vmem:[#allocation2 + $0xe8] sm:$0xff] %vm361, 0.0
        %392 = vst.msk [vmem:[#allocation2 + $0xf0] sm:$0xff] %vm361, 0.0
        %393 = vst.msk [vmem:[#allocation2 + $0xf8] sm:$0xff] %vm361, 0.0
      $region48: #{non_local_block.3} parent=43 // pred_fallthru
        _
      %v394 = vld [vmem:[%s325] sm:$0xff]
      %v395 = vld [vmem:[%s325 + $0x8] sm:$0xff]
      %v396 = vld [vmem:[%s325 + $0x10] sm:$0xff]
      %v397 = vld [vmem:[%s325 + $0x18] sm:$0xff]
      %v398 = vld [vmem:[%s325 + $0x20] sm:$0xff]
      %v399 = vld [vmem:[%s325 + $0x28] sm:$0xff]
      %v400 = vld [vmem:[%s325 + $0x30] sm:$0xff]
      %v401 = vld [vmem:[%s325 + $0x38] sm:$0xff]
      %v402 = vld [vmem:[%s325 + $0x40] sm:$0xff]
      %v403 = vld [vmem:[%s325 + $0x48] sm:$0xff]
      %v404 = vld [vmem:[%s325 + $0x50] sm:$0xff]
      %v405 = vld [vmem:[%s325 + $0x58] sm:$0xff]
      %v406 = vld [vmem:[%s325 + $0x60] sm:$0xff]
      %v407 = vld [vmem:[%s325 + $0x68] sm:$0xff]
      %v408 = vld [vmem:[%s325 + $0x70] sm:$0xff]
      %v409 = vld [vmem:[%s325 + $0x78] sm:$0xff]
      %v410 = vld [vmem:[%s325 + $0x80] sm:$0xff]
      %v411 = vld [vmem:[%s325 + $0x88] sm:$0xff]
      %v412 = vld [vmem:[%s325 + $0x90] sm:$0xff]
      %v413 = vld [vmem:[%s325 + $0x98] sm:$0xff]
      %v414 = vld [vmem:[%s325 + $0xa0] sm:$0xff]
      %v415 = vld [vmem:[%s325 + $0xa8] sm:$0xff]
      %v416 = vld [vmem:[%s325 + $0xb0] sm:$0xff]
      %v417 = vld [vmem:[%s325 + $0xb8] sm:$0xff]
      %v418 = vld [vmem:[%s325 + $0xc0] sm:$0xff]
      %v419 = vld [vmem:[%s325 + $0xc8] sm:$0xff]
      %v420 = vld [vmem:[%s325 + $0xd0] sm:$0xff]
      %v421 = vld [vmem:[%s325 + $0xd8] sm:$0xff]
      %v422 = vld [vmem:[%s325 + $0xe0] sm:$0xff]
      %v423 = vld [vmem:[%s325 + $0xe8] sm:$0xff]
      %v424 = vld [vmem:[%s325 + $0xf0] sm:$0xff]
      %v425 = vld [vmem:[%s325 + $0xf8] sm:$0xff]
      %v426 = vpack.c.bf16 %v395, %v394
      %v427 = vpack.c.bf16 %v397, %v396
      %v428 = vpack.c.bf16 %v399, %v398
      %v429 = vpack.c.bf16 %v401, %v400
      %v430 = vpack.c.bf16 %v403, %v402
      %v431 = vpack.c.bf16 %v405, %v404
      %v432 = vpack.c.bf16 %v407, %v406
      %v433 = vpack.c.bf16 %v409, %v408
      %v434 = vpack.c.bf16 %v411, %v410
      %v435 = vpack.c.bf16 %v413, %v412
      %v436 = vpack.c.bf16 %v415, %v414
      %v437 = vpack.c.bf16 %v417, %v416
      %v438 = vpack.c.bf16 %v419, %v418
      %v439 = vpack.c.bf16 %v421, %v420
      %v440 = vpack.c.bf16 %v423, %v422
      %v441 = vpack.c.bf16 %v425, %v424
      %v442 = vld [vmem:[%s334] sm:$0xf]
      %v445 = vunpack.c.l.s4 1983009808
      %v446 = vunpack.c.0.s8 %v445
      %v447 = vlaneseq
      %v448 = vshrl.u32 %v447, 7
      %v449 = vsub.s32 %v446, %v448
      %v450 = vrot.slane %v442, %v449
      %v451 = vcombine.high %v450, %v450
      %v454 = vpack.c.bf16 %v450, %v450
      %v455 = vpack.c.bf16 %v451, %v451
      %vm456 = vcmask 15360
      %v458 = vsel %vm456, %v426, 0
      %v461 = vsel %vm456, %v427, 0
      %v464 = vsel %vm456, %v428, 0
      %v467 = vsel %vm456, %v429, 0
      %v470 = vsel %vm456, %v430, 0
      %v473 = vsel %vm456, %v431, 0
      %v476 = vsel %vm456, %v432, 0
      %v479 = vsel %vm456, %v433, 0
      %v482 = vsel %vm456, %v434, 0
      %v485 = vsel %vm456, %v435, 0
      %v488 = vsel %vm456, %v436, 0
      %v491 = vsel %vm456, %v437, 0
      %v494 = vsel %vm456, %v438, 0
      %v497 = vsel %vm456, %v439, 0
      %v500 = vsel %vm456, %v440, 0
      %v503 = vsel %vm456, %v441, 0
      %vm505 = vcmask 1040384
      %v507 = vsel %vm505, %v454, 0
      %v510 = vsel %vm505, %v455, 0
      %512 = vmatprep.subr.bf16.mxu0 0
      %513 = vmatpush1.bf16.msra.mxu0 0
      %514 = vmatprep.subr.bf16.mxu0 0
      %515 = vmatpush1.bf16.msra.mxu0 0
      %516 = vmatprep.subr.bf16.mxu0 0
      %517 = vmatpush1.bf16.msra.mxu0 0
      %518 = vmatprep.subr.bf16.mxu0 0
      %519 = vmatpush1.bf16.msra.mxu0 0
      %520 = vmatprep.subr.bf16.mxu0 0
      %521 = vmatpush1.bf16.msra.mxu0 0
      %522 = vmatprep.subr.bf16.mxu0 0
      %523 = vmatpush1.bf16.msra.mxu0 0
      %524 = vmatprep.subr.bf16.mxu0 0
      %525 = vmatpush1.bf16.msra.mxu0 0
      %526 = vmatprep.subr.bf16.mxu0 %v510
      %527 = vmatpush1.bf16.msra.mxu0 %v507
      %528 = vmatprep.subr.bf16.mxu0 0
      %529 = vmatpush2.bf16.msra.mxu0 0
      %530 = vmatprep.subr.bf16.mxu0 0
      %531 = vmatpush2.bf16.msra.mxu0 0
      %532 = vmatprep.subr.bf16.mxu0 0
      %533 = vmatpush2.bf16.msra.mxu0 0
      %534 = vmatprep.subr.bf16.mxu0 0
      %535 = vmatpush2.bf16.msra.mxu0 0
      %536 = vmatprep.subr.bf16.mxu0 0
      %537 = vmatpush2.bf16.msra.mxu0 0
      %538 = vmatprep.subr.bf16.mxu0 0
      %539 = vmatpush2.bf16.msra.mxu0 0
      %540 = vmatprep.subr.bf16.mxu0 0
      %541 = vmatpush2.bf16.msra.mxu0 0
      %542 = vmatprep.subr.bf16.mxu0 0
      %543 = vmatpush2.bf16.msra.mxu0 0
      %544 = vmatprep.mubr.bf16.mxu0 0
      %545 = vmatmul.mubr.bf16.gmra.mxu0 %v458
      %v546 = vpop.f32.mrf.mxu0
      %v547 = vadd.f32 0.0, %v546
      %v548 = vpop.f32.mrf.mxu0
      %v549 = vadd.f32 0.0, %v548
      %v550 = vpop.f32.mrf.mxu0
      %v551 = vadd.f32 0.0, %v550
      %v552 = vpop.f32.mrf.mxu0
      %v553 = vadd.f32 0.0, %v552
      %554 = vmatprep.mubr.bf16.mxu0 0
      %555 = vmatmul.mubr.bf16.gmra.mxu0 %v461
      %v556 = vpop.f32.mrf.mxu0
      %v557 = vadd.f32 0.0, %v556
      %v558 = vpop.f32.mrf.mxu0
      %v559 = vadd.f32 0.0, %v558
      %v560 = vpop.f32.mrf.mxu0
      %v561 = vadd.f32 0.0, %v560
      %v562 = vpop.f32.mrf.mxu0
      %v563 = vadd.f32 0.0, %v562
      %564 = vmatprep.mubr.bf16.mxu0 0
      %565 = vmatmul.mubr.bf16.gmra.mxu0 %v464
      %v566 = vpop.f32.mrf.mxu0
      %v567 = vadd.f32 0.0, %v566
      %v568 = vpop.f32.mrf.mxu0
      %v569 = vadd.f32 0.0, %v568
      %v570 = vpop.f32.mrf.mxu0
      %v571 = vadd.f32 0.0, %v570
      %v572 = vpop.f32.mrf.mxu0
      %v573 = vadd.f32 0.0, %v572
      %574 = vmatprep.mubr.bf16.mxu0 0
      %575 = vmatmul.mubr.bf16.gmra.mxu0 %v467
      %v576 = vpop.f32.mrf.mxu0
      %v577 = vadd.f32 0.0, %v576
      %v578 = vpop.f32.mrf.mxu0
      %v579 = vadd.f32 0.0, %v578
      %v580 = vpop.f32.mrf.mxu0
      %v581 = vadd.f32 0.0, %v580
      %v582 = vpop.f32.mrf.mxu0
      %v583 = vadd.f32 0.0, %v582
      %584 = vmatprep.mubr.bf16.mxu0 0
      %585 = vmatmul.mubr.bf16.gmra.mxu0 %v470
      %v586 = vpop.f32.mrf.mxu0
      %v587 = vadd.f32 0.0, %v586
      %v588 = vpop.f32.mrf.mxu0
      %v589 = vadd.f32 0.0, %v588
      %v590 = vpop.f32.mrf.mxu0
      %v591 = vadd.f32 0.0, %v590
      %v592 = vpop.f32.mrf.mxu0
      %v593 = vadd.f32 0.0, %v592
      %594 = vmatprep.mubr.bf16.mxu0 0
      %595 = vmatmul.mubr.bf16.gmra.mxu0 %v473
      %v596 = vpop.f32.mrf.mxu0
      %v597 = vadd.f32 0.0, %v596
      %v598 = vpop.f32.mrf.mxu0
      %v599 = vadd.f32 0.0, %v598
      %v600 = vpop.f32.mrf.mxu0
      %v601 = vadd.f32 0.0, %v600
      %v602 = vpop.f32.mrf.mxu0
      %v603 = vadd.f32 0.0, %v602
      %604 = vmatprep.mubr.bf16.mxu0 0
      %605 = vmatmul.mubr.bf16.gmra.mxu0 %v476
      %v606 = vpop.f32.mrf.mxu0
      %v607 = vadd.f32 0.0, %v606
      %v608 = vpop.f32.mrf.mxu0
      %v609 = vadd.f32 0.0, %v608
      %v610 = vpop.f32.mrf.mxu0
      %v611 = vadd.f32 0.0, %v610
      %v612 = vpop.f32.mrf.mxu0
      %v613 = vadd.f32 0.0, %v612
      %614 = vmatprep.mubr.bf16.mxu0 0
      %615 = vmatmul.mubr.bf16.gmra.mxu0 %v479
      %v616 = vpop.f32.mrf.mxu0
      %v617 = vadd.f32 0.0, %v616
      %v618 = vpop.f32.mrf.mxu0
      %v619 = vadd.f32 0.0, %v618
      %v620 = vpop.f32.mrf.mxu0
      %v621 = vadd.f32 0.0, %v620
      %v622 = vpop.f32.mrf.mxu0
      %v623 = vadd.f32 0.0, %v622
      %624 = vmatprep.mubr.bf16.mxu0 0
      %625 = vmatmul.mubr.bf16.gmra.mxu0 %v482
      %v626 = vpop.f32.mrf.mxu0
      %v627 = vadd.f32 0.0, %v626
      %v628 = vpop.f32.mrf.mxu0
      %v629 = vadd.f32 0.0, %v628
      %v630 = vpop.f32.mrf.mxu0
      %v631 = vadd.f32 0.0, %v630
      %v632 = vpop.f32.mrf.mxu0
      %v633 = vadd.f32 0.0, %v632
      %634 = vmatprep.mubr.bf16.mxu0 0
      %635 = vmatmul.mubr.bf16.gmra.mxu0 %v485
      %v636 = vpop.f32.mrf.mxu0
      %v637 = vadd.f32 0.0, %v636
      %v638 = vpop.f32.mrf.mxu0
      %v639 = vadd.f32 0.0, %v638
      %v640 = vpop.f32.mrf.mxu0
      %v641 = vadd.f32 0.0, %v640
      %v642 = vpop.f32.mrf.mxu0
      %v643 = vadd.f32 0.0, %v642
      %644 = vmatprep.mubr.bf16.mxu0 0
      %645 = vmatmul.mubr.bf16.gmra.mxu0 %v488
      %v646 = vpop.f32.mrf.mxu0
      %v647 = vadd.f32 0.0, %v646
      %v648 = vpop.f32.mrf.mxu0
      %v649 = vadd.f32 0.0, %v648
      %v650 = vpop.f32.mrf.mxu0
      %v651 = vadd.f32 0.0, %v650
      %v652 = vpop.f32.mrf.mxu0
      %v653 = vadd.f32 0.0, %v652
      %654 = vmatprep.mubr.bf16.mxu0 0
      %655 = vmatmul.mubr.bf16.gmra.mxu0 %v491
      %v656 = vpop.f32.mrf.mxu0
      %v657 = vadd.f32 0.0, %v656
      %v658 = vpop.f32.mrf.mxu0
      %v659 = vadd.f32 0.0, %v658
      %v660 = vpop.f32.mrf.mxu0
      %v661 = vadd.f32 0.0, %v660
      %v662 = vpop.f32.mrf.mxu0
      %v663 = vadd.f32 0.0, %v662
      %664 = vmatprep.mubr.bf16.mxu0 0
      %665 = vmatmul.mubr.bf16.gmra.mxu0 %v494
      %v666 = vpop.f32.mrf.mxu0
      %v667 = vadd.f32 0.0, %v666
      %v668 = vpop.f32.mrf.mxu0
      %v669 = vadd.f32 0.0, %v668
      %v670 = vpop.f32.mrf.mxu0
      %v671 = vadd.f32 0.0, %v670
      %v672 = vpop.f32.mrf.mxu0
      %v673 = vadd.f32 0.0, %v672
      %674 = vmatprep.mubr.bf16.mxu0 0
      %675 = vmatmul.mubr.bf16.gmra.mxu0 %v497
      %v676 = vpop.f32.mrf.mxu0
      %v677 = vadd.f32 0.0, %v676
      %v678 = vpop.f32.mrf.mxu0
      %v679 = vadd.f32 0.0, %v678
      %v680 = vpop.f32.mrf.mxu0
      %v681 = vadd.f32 0.0, %v680
      %v682 = vpop.f32.mrf.mxu0
      %v683 = vadd.f32 0.0, %v682
      %684 = vmatprep.mubr.bf16.mxu0 0
      %685 = vmatmul.mubr.bf16.gmra.mxu0 %v500
      %v686 = vpop.f32.mrf.mxu0
      %v687 = vadd.f32 0.0, %v686
      %v688 = vpop.f32.mrf.mxu0
      %v689 = vadd.f32 0.0, %v688
      %v690 = vpop.f32.mrf.mxu0
      %v691 = vadd.f32 0.0, %v690
      %v692 = vpop.f32.mrf.mxu0
      %v693 = vadd.f32 0.0, %v692
      %694 = vmatprep.mubr.bf16.mxu0 0
      %695 = vmatmul.mubr.bf16.gmra.mxu0 %v503
      %v696 = vpop.f32.mrf.mxu0
      %v697 = vadd.f32 0.0, %v696
      %v698 = vpop.f32.mrf.mxu0
      %v699 = vadd.f32 0.0, %v698
      %v700 = vpop.f32.mrf.mxu0
      %v701 = vadd.f32 0.0, %v700
      %v702 = vpop.f32.mrf.mxu0
      %v703 = vadd.f32 0.0, %v702
      %704 = vdwg.mxu0
      %v705 = vmax.f32 %v547, %v557
      %v706 = vmax.f32 %v551, %v561
      %v707 = vmax.f32 %v705, %v567
      %v708 = vmax.f32 %v706, %v571
      %v709 = vmax.f32 %v707, %v577
      %v710 = vmax.f32 %v708, %v581
      %v711 = vmax.f32 %v709, %v587
      %v712 = vmax.f32 %v710, %v591
      %v713 = vmax.f32 %v711, %v597
      %v714 = vmax.f32 %v712, %v601
      %v715 = vmax.f32 %v713, %v607
      %v716 = vmax.f32 %v714, %v611
      %v717 = vmax.f32 %v715, %v617
      %v718 = vmax.f32 %v716, %v621
      %v719 = vmax.f32 %v717, %v627
      %v720 = vmax.f32 %v718, %v631
      %v721 = vmax.f32 %v719, %v637
      %v722 = vmax.f32 %v720, %v641
      %v723 = vmax.f32 %v721, %v647
      %v724 = vmax.f32 %v722, %v651
      %v725 = vmax.f32 %v723, %v657
      %v726 = vmax.f32 %v724, %v661
      %v727 = vmax.f32 %v725, %v667
      %v728 = vmax.f32 %v726, %v671
      %v729 = vmax.f32 %v727, %v677
      %v730 = vmax.f32 %v728, %v681
      %v731 = vmax.f32 %v729, %v687
      %v732 = vmax.f32 %v730, %v691
      %v733 = vmax.f32 %v731, %v697
      %v734 = vmax.f32 %v732, %v701
      %v735 = vmax.f32 %v733, %v734
      %v736 = vrot.slane %v735, 4
      %v737 = vmax.f32 %v735, %v736
      %v738 = vrot.slane %v737, 2
      %v739 = vmax.f32 %v737, %v738
      %v740 = vrot.slane %v739, 1
      %v741 = vmax.f32 %v739, %v740
      %v742 = vmax.f32 %v549, %v559
      %v743 = vmax.f32 %v553, %v563
      %v744 = vmax.f32 %v742, %v569
      %v745 = vmax.f32 %v743, %v573
      %v746 = vmax.f32 %v744, %v579
      %v747 = vmax.f32 %v745, %v583
      %v748 = vmax.f32 %v746, %v589
      %v749 = vmax.f32 %v747, %v593
      %v750 = vmax.f32 %v748, %v599
      %v751 = vmax.f32 %v749, %v603
      %v752 = vmax.f32 %v750, %v609
      %v753 = vmax.f32 %v751, %v613
      %v754 = vmax.f32 %v752, %v619
      %v755 = vmax.f32 %v753, %v623
      %v756 = vmax.f32 %v754, %v629
      %v757 = vmax.f32 %v755, %v633
      %v758 = vmax.f32 %v756, %v639
      %v759 = vmax.f32 %v757, %v643
      %v760 = vmax.f32 %v758, %v649
      %v761 = vmax.f32 %v759, %v653
      %v762 = vmax.f32 %v760, %v659
      %v763 = vmax.f32 %v761, %v663
      %v764 = vmax.f32 %v762, %v669
      %v765 = vmax.f32 %v763, %v673
      %v766 = vmax.f32 %v764, %v679
      %v767 = vmax.f32 %v765, %v683
      %v768 = vmax.f32 %v766, %v689
      %v769 = vmax.f32 %v767, %v693
      %v770 = vmax.f32 %v768, %v699
      %v771 = vmax.f32 %v769, %v703
      %v772 = vmax.f32 %v770, %v771
      %v773 = vrot.slane %v772, 4
      %v774 = vmax.f32 %v772, %v773
      %v775 = vrot.slane %v774, 2
      %v776 = vmax.f32 %v774, %v775
      %v777 = vrot.slane %v776, 1
      %v778 = vmax.f32 %v776, %v777
      %v779 = vsub.f32 %v547, %v741
      %v780 = vsub.f32 %v549, %v778
      %v781 = vsub.f32 %v551, %v741
      %v782 = vsub.f32 %v553, %v778
      %v783 = vsub.f32 %v557, %v741
      %v784 = vsub.f32 %v559, %v778
      %v785 = vsub.f32 %v561, %v741
      %v786 = vsub.f32 %v563, %v778
      %v787 = vsub.f32 %v567, %v741
      %v788 = vsub.f32 %v569, %v778
      %v789 = vsub.f32 %v571, %v741
      %v790 = vsub.f32 %v573, %v778
      %v791 = vsub.f32 %v577, %v741
      %v792 = vsub.f32 %v579, %v778
      %v793 = vsub.f32 %v581, %v741
      %v794 = vsub.f32 %v583, %v778
      %v795 = vsub.f32 %v587, %v741
      %v796 = vsub.f32 %v589, %v778
      %v797 = vsub.f32 %v591, %v741
      %v798 = vsub.f32 %v593, %v778
      %v799 = vsub.f32 %v597, %v741
      %v800 = vsub.f32 %v599, %v778
      %v801 = vsub.f32 %v601, %v741
      %v802 = vsub.f32 %v603, %v778
      %v803 = vsub.f32 %v607, %v741
      %v804 = vsub.f32 %v609, %v778
      %v805 = vsub.f32 %v611, %v741
      %v806 = vsub.f32 %v613, %v778
      %v807 = vsub.f32 %v617, %v741
      %v808 = vsub.f32 %v619, %v778
      %v809 = vsub.f32 %v621, %v741
      %v810 = vsub.f32 %v623, %v778
      %v811 = vsub.f32 %v627, %v741
      %v812 = vsub.f32 %v629, %v778
      %v813 = vsub.f32 %v631, %v741
      %v814 = vsub.f32 %v633, %v778
      %v815 = vsub.f32 %v637, %v741
      %v816 = vsub.f32 %v639, %v778
      %v817 = vsub.f32 %v641, %v741
      %v818 = vsub.f32 %v643, %v778
      %v819 = vsub.f32 %v647, %v741
      %v820 = vsub.f32 %v649, %v778
      %v821 = vsub.f32 %v651, %v741
      %v822 = vsub.f32 %v653, %v778
      %v823 = vsub.f32 %v657, %v741
      %v824 = vsub.f32 %v659, %v778
      %v825 = vsub.f32 %v661, %v741
      %v826 = vsub.f32 %v663, %v778
      %v827 = vsub.f32 %v667, %v741
      %v828 = vsub.f32 %v669, %v778
      %v829 = vsub.f32 %v671, %v741
      %v830 = vsub.f32 %v673, %v778
      %v831 = vsub.f32 %v677, %v741
      %v832 = vsub.f32 %v679, %v778
      %v833 = vsub.f32 %v681, %v741
      %v834 = vsub.f32 %v683, %v778
      %v835 = vsub.f32 %v687, %v741
      %v836 = vsub.f32 %v689, %v778
      %v837 = vsub.f32 %v691, %v741
      %v838 = vsub.f32 %v693, %v778
      %v839 = vsub.f32 %v697, %v741
      %v840 = vsub.f32 %v699, %v778
      %v841 = vsub.f32 %v701, %v741
      %v842 = vsub.f32 %v703, %v778
      %v843 = vmul.f32 %v779, 1.442695
      %v844 = vpow.pop %v843
      %v845 = vmul.f32 %v780, 1.442695
      %v846 = vpow.pop %v845
      %v847 = vmul.f32 %v781, 1.442695
      %v848 = vpow.pop %v847
      %v849 = vmul.f32 %v782, 1.442695
      %v850 = vpow.pop %v849
      %v851 = vmul.f32 %v783, 1.442695
      %v852 = vpow.pop %v851
      %v853 = vmul.f32 %v784, 1.442695
      %v854 = vpow.pop %v853
      %v855 = vmul.f32 %v785, 1.442695
      %v856 = vpow.pop %v855
      %v857 = vmul.f32 %v786, 1.442695
      %v858 = vpow.pop %v857
      %v859 = vmul.f32 %v787, 1.442695
      %v860 = vpow.pop %v859
      %v861 = vmul.f32 %v788, 1.442695
      %v862 = vpow.pop %v861
      %v863 = vmul.f32 %v789, 1.442695
      %v864 = vpow.pop %v863
      %v865 = vmul.f32 %v790, 1.442695
      %v866 = vpow.pop %v865
      %v867 = vmul.f32 %v791, 1.442695
      %v868 = vpow.pop %v867
      %v869 = vmul.f32 %v792, 1.442695
      %v870 = vpow.pop %v869
      %v871 = vmul.f32 %v793, 1.442695
      %v872 = vpow.pop %v871
      %v873 = vmul.f32 %v794, 1.442695
      %v874 = vpow.pop %v873
      %v875 = vmul.f32 %v795, 1.442695
      %v876 = vpow.pop %v875
      %v877 = vmul.f32 %v796, 1.442695
      %v878 = vpow.pop %v877
      %v879 = vmul.f32 %v797, 1.442695
      %v880 = vpow.pop %v879
      %v881 = vmul.f32 %v798, 1.442695
      %v882 = vpow.pop %v881
      %v883 = vmul.f32 %v799, 1.442695
      %v884 = vpow.pop %v883
      %v885 = vmul.f32 %v800, 1.442695
      %v886 = vpow.pop %v885
      %v887 = vmul.f32 %v801, 1.442695
      %v888 = vpow.pop %v887
      %v889 = vmul.f32 %v802, 1.442695
      %v890 = vpow.pop %v889
      %v891 = vmul.f32 %v803, 1.442695
      %v892 = vpow.pop %v891
      %v893 = vmul.f32 %v804, 1.442695
      %v894 = vpow.pop %v893
      %v895 = vmul.f32 %v805, 1.442695
      %v896 = vpow.pop %v895
      %v897 = vmul.f32 %v806, 1.442695
      %v898 = vpow.pop %v897
      %v899 = vmul.f32 %v807, 1.442695
      %v900 = vpow.pop %v899
      %v901 = vmul.f32 %v808, 1.442695
      %v902 = vpow.pop %v901
      %v903 = vmul.f32 %v809, 1.442695
      %v904 = vpow.pop %v903
      %v905 = vmul.f32 %v810, 1.442695
      %v906 = vpow.pop %v905
      %v907 = vmul.f32 %v811, 1.442695
      %v908 = vpow.pop %v907
      %v909 = vmul.f32 %v812, 1.442695
      %v910 = vpow.pop %v909
      %v911 = vmul.f32 %v813, 1.442695
      %v912 = vpow.pop %v911
      %v913 = vmul.f32 %v814, 1.442695
      %v914 = vpow.pop %v913
      %v915 = vmul.f32 %v815, 1.442695
      %v916 = vpow.pop %v915
      %v917 = vmul.f32 %v816, 1.442695
      %v918 = vpow.pop %v917
      %v919 = vmul.f32 %v817, 1.442695
      %v920 = vpow.pop %v919
      %v921 = vmul.f32 %v818, 1.442695
      %v922 = vpow.pop %v921
      %v923 = vmul.f32 %v819, 1.442695
      %v924 = vpow.pop %v923
      %v925 = vmul.f32 %v820, 1.442695
      %v926 = vpow.pop %v925
      %v927 = vmul.f32 %v821, 1.442695
      %v928 = vpow.pop %v927
      %v929 = vmul.f32 %v822, 1.442695
      %v930 = vpow.pop %v929
      %v931 = vmul.f32 %v823, 1.442695
      %v932 = vpow.pop %v931
      %v933 = vmul.f32 %v824, 1.442695
      %v934 = vpow.pop %v933
      %v935 = vmul.f32 %v825, 1.442695
      %v936 = vpow.pop %v935
      %v937 = vmul.f32 %v826, 1.442695
      %v938 = vpow.pop %v937
      %v939 = vmul.f32 %v827, 1.442695
      %v940 = vpow.pop %v939
      %v941 = vmul.f32 %v828, 1.442695
      %v942 = vpow.pop %v941
      %v943 = vmul.f32 %v829, 1.442695
      %v944 = vpow.pop %v943
      %v945 = vmul.f32 %v830, 1.442695
      %v946 = vpow.pop %v945
      %v947 = vmul.f32 %v831, 1.442695
      %v948 = vpow.pop %v947
      %v949 = vmul.f32 %v832, 1.442695
      %v950 = vpow.pop %v949
      %v951 = vmul.f32 %v833, 1.442695
      %v952 = vpow.pop %v951
      %v953 = vmul.f32 %v834, 1.442695
      %v954 = vpow.pop %v953
      %v955 = vmul.f32 %v835, 1.442695
      %v956 = vpow.pop %v955
      %v957 = vmul.f32 %v836, 1.442695
      %v958 = vpow.pop %v957
      %v959 = vmul.f32 %v837, 1.442695
      %v960 = vpow.pop %v959
      %v961 = vmul.f32 %v838, 1.442695
      %v962 = vpow.pop %v961
      %v963 = vmul.f32 %v839, 1.442695
      %v964 = vpow.pop %v963
      %v965 = vmul.f32 %v840, 1.442695
      %v966 = vpow.pop %v965
      %v967 = vmul.f32 %v841, 1.442695
      %v968 = vpow.pop %v967
      %v969 = vmul.f32 %v842, 1.442695
      %v970 = vpow.pop %v969
      %v971 = vadd.f32 %v844, %v848
      %v972 = vadd.f32 %v971, %v852
      %v973 = vadd.f32 %v972, %v856
      %v974 = vadd.f32 %v973, %v860
      %v975 = vadd.f32 %v974, %v864
      %v976 = vadd.f32 %v975, %v868
      %v977 = vadd.f32 %v976, %v872
      %v978 = vadd.f32 %v977, %v876
      %v979 = vadd.f32 %v978, %v880
      %v980 = vadd.f32 %v979, %v884
      %v981 = vadd.f32 %v980, %v888
      %v982 = vadd.f32 %v981, %v892
      %v983 = vadd.f32 %v982, %v896
      %v984 = vadd.f32 %v983, %v900
      %v985 = vadd.f32 %v984, %v904
      %v986 = vadd.f32 %v985, %v908
      %v987 = vadd.f32 %v986, %v912
      %v988 = vadd.f32 %v987, %v916
      %v989 = vadd.f32 %v988, %v920
      %v990 = vadd.f32 %v989, %v924
      %v991 = vadd.f32 %v990, %v928
      %v992 = vadd.f32 %v991, %v932
      %v993 = vadd.f32 %v992, %v936
      %v994 = vadd.f32 %v993, %v940
      %v995 = vadd.f32 %v994, %v944
      %v996 = vadd.f32 %v995, %v948
      %v997 = vadd.f32 %v996, %v952
      %v998 = vadd.f32 %v997, %v956
      %v999 = vadd.f32 %v998, %v960
      %v1000 = vadd.f32 %v999, %v964
      %v1001 = vadd.f32 %v1000, %v968
      %v1002 = vrot.slane %v1001, 4
      %v1003 = vadd.f32 %v1001, %v1002
      %v1004 = vrot.slane %v1003, 2
      %v1005 = vadd.f32 %v1003, %v1004
      %v1006 = vrot.slane %v1005, 1
      %v1007 = vadd.f32 %v1005, %v1006
      %v1008 = vadd.f32 %v846, %v850
      %v1009 = vadd.f32 %v1008, %v854
      %v1010 = vadd.f32 %v1009, %v858
      %v1011 = vadd.f32 %v1010, %v862
      %v1012 = vadd.f32 %v1011, %v866
      %v1013 = vadd.f32 %v1012, %v870
      %v1014 = vadd.f32 %v1013, %v874
      %v1015 = vadd.f32 %v1014, %v878
      %v1016 = vadd.f32 %v1015, %v882
      %v1017 = vadd.f32 %v1016, %v886
      %v1018 = vadd.f32 %v1017, %v890
      %v1019 = vadd.f32 %v1018, %v894
      %v1020 = vadd.f32 %v1019, %v898
      %v1021 = vadd.f32 %v1020, %v902
      %v1022 = vadd.f32 %v1021, %v906
      %v1023 = vadd.f32 %v1022, %v910
      %v1024 = vadd.f32 %v1023, %v914
      %v1025 = vadd.f32 %v1024, %v918
      %v1026 = vadd.f32 %v1025, %v922
      %v1027 = vadd.f32 %v1026, %v926
      %v1028 = vadd.f32 %v1027, %v930
      %v1029 = vadd.f32 %v1028, %v934
      %v1030 = vadd.f32 %v1029, %v938
      %v1031 = vadd.f32 %v1030, %v942
      %v1032 = vadd.f32 %v1031, %v946
      %v1033 = vadd.f32 %v1032, %v950
      %v1034 = vadd.f32 %v1033, %v954
      %v1035 = vadd.f32 %v1034, %v958
      %v1036 = vadd.f32 %v1035, %v962
      %v1037 = vadd.f32 %v1036, %v966
      %v1038 = vadd.f32 %v1037, %v970
      %v1039 = vrot.slane %v1038, 4
      %v1040 = vadd.f32 %v1038, %v1039
      %v1041 = vrot.slane %v1040, 2
      %v1042 = vadd.f32 %v1040, %v1041
      %v1043 = vrot.slane %v1042, 1
      %v1044 = vadd.f32 %v1042, %v1043
      %v1045 = vrcp.pop %v1007
      %v1046 = vrcp.pop %v1044
      %v1047 = vmul.f32 %v844, %v1045
      %v1048 = vmul.f32 %v846, %v1046
      %v1049 = vmul.f32 %v848, %v1045
      %v1050 = vmul.f32 %v850, %v1046
      %v1051 = vmul.f32 %v852, %v1045
      %v1052 = vmul.f32 %v854, %v1046
      %v1053 = vmul.f32 %v856, %v1045
      %v1054 = vmul.f32 %v858, %v1046
      %v1055 = vmul.f32 %v860, %v1045
      %v1056 = vmul.f32 %v862, %v1046
      %v1057 = vmul.f32 %v864, %v1045
      %v1058 = vmul.f32 %v866, %v1046
      %v1059 = vmul.f32 %v868, %v1045
      %v1060 = vmul.f32 %v870, %v1046
      %v1061 = vmul.f32 %v872, %v1045
      %v1062 = vmul.f32 %v874, %v1046
      %v1063 = vmul.f32 %v876, %v1045
      %v1064 = vmul.f32 %v878, %v1046
      %v1065 = vmul.f32 %v880, %v1045
      %v1066 = vmul.f32 %v882, %v1046
      %v1067 = vmul.f32 %v884, %v1045
      %v1068 = vmul.f32 %v886, %v1046
      %v1069 = vmul.f32 %v888, %v1045
      %v1070 = vmul.f32 %v890, %v1046
      %v1071 = vmul.f32 %v892, %v1045
      %v1072 = vmul.f32 %v894, %v1046
      %v1073 = vmul.f32 %v896, %v1045
      %v1074 = vmul.f32 %v898, %v1046
      %v1075 = vmul.f32 %v900, %v1045
      %v1076 = vmul.f32 %v902, %v1046
      %v1077 = vmul.f32 %v904, %v1045
      %v1078 = vmul.f32 %v906, %v1046
      %v1079 = vmul.f32 %v908, %v1045
      %v1080 = vmul.f32 %v910, %v1046
      %v1081 = vmul.f32 %v912, %v1045
      %v1082 = vmul.f32 %v914, %v1046
      %v1083 = vmul.f32 %v916, %v1045
      %v1084 = vmul.f32 %v918, %v1046
      %v1085 = vmul.f32 %v920, %v1045
      %v1086 = vmul.f32 %v922, %v1046
      %v1087 = vmul.f32 %v924, %v1045
      %v1088 = vmul.f32 %v926, %v1046
      %v1089 = vmul.f32 %v928, %v1045
      %v1090 = vmul.f32 %v930, %v1046
      %v1091 = vmul.f32 %v932, %v1045
      %v1092 = vmul.f32 %v934, %v1046
      %v1093 = vmul.f32 %v936, %v1045
      %v1094 = vmul.f32 %v938, %v1046
      %v1095 = vmul.f32 %v940, %v1045
      %v1096 = vmul.f32 %v942, %v1046
      %v1097 = vmul.f32 %v944, %v1045
      %v1098 = vmul.f32 %v946, %v1046
      %v1099 = vmul.f32 %v948, %v1045
      %v1100 = vmul.f32 %v950, %v1046
      %v1101 = vmul.f32 %v952, %v1045
      %v1102 = vmul.f32 %v954, %v1046
      %v1103 = vmul.f32 %v956, %v1045
      %v1104 = vmul.f32 %v958, %v1046
      %v1105 = vmul.f32 %v960, %v1045
      %v1106 = vmul.f32 %v962, %v1046
      %v1107 = vmul.f32 %v964, %v1045
      %v1108 = vmul.f32 %v966, %v1046
      %v1109 = vmul.f32 %v968, %v1045
      %v1110 = vmul.f32 %v970, %v1046
      %v1111 = vld [vmem:[#allocation2] sm:$0xff]
      %v1112 = vld [vmem:[#allocation2 + $0x8] sm:$0xff]
      %v1113 = vld [vmem:[#allocation2 + $0x10] sm:$0xff]
      %v1114 = vld [vmem:[#allocation2 + $0x18] sm:$0xff]
      %v1115 = vld [vmem:[#allocation2 + $0x20] sm:$0xff]
      %v1116 = vld [vmem:[#allocation2 + $0x28] sm:$0xff]
      %v1117 = vld [vmem:[#allocation2 + $0x30] sm:$0xff]
      %v1118 = vld [vmem:[#allocation2 + $0x38] sm:$0xff]
      %v1119 = vld [vmem:[#allocation2 + $0x40] sm:$0xff]
      %v1120 = vld [vmem:[#allocation2 + $0x48] sm:$0xff]
      %v1121 = vld [vmem:[#allocation2 + $0x50] sm:$0xff]
      %v1122 = vld [vmem:[#allocation2 + $0x58] sm:$0xff]
      %v1123 = vld [vmem:[#allocation2 + $0x60] sm:$0xff]
      %v1124 = vld [vmem:[#allocation2 + $0x68] sm:$0xff]
      %v1125 = vld [vmem:[#allocation2 + $0x70] sm:$0xff]
      %v1126 = vld [vmem:[#allocation2 + $0x78] sm:$0xff]
      %v1127 = vld [vmem:[#allocation2 + $0x80] sm:$0xff]
      %v1128 = vld [vmem:[#allocation2 + $0x88] sm:$0xff]
      %v1129 = vld [vmem:[#allocation2 + $0x90] sm:$0xff]
      %v1130 = vld [vmem:[#allocation2 + $0x98] sm:$0xff]
      %v1131 = vld [vmem:[#allocation2 + $0xa0] sm:$0xff]
      %v1132 = vld [vmem:[#allocation2 + $0xa8] sm:$0xff]
      %v1133 = vld [vmem:[#allocation2 + $0xb0] sm:$0xff]
      %v1134 = vld [vmem:[#allocation2 + $0xb8] sm:$0xff]
      %v1135 = vld [vmem:[#allocation2 + $0xc0] sm:$0xff]
      %v1136 = vld [vmem:[#allocation2 + $0xc8] sm:$0xff]
      %v1137 = vld [vmem:[#allocation2 + $0xd0] sm:$0xff]
      %v1138 = vld [vmem:[#allocation2 + $0xd8] sm:$0xff]
      %v1139 = vld [vmem:[#allocation2 + $0xe0] sm:$0xff]
      %v1140 = vld [vmem:[#allocation2 + $0xe8] sm:$0xff]
      %v1141 = vld [vmem:[#allocation2 + $0xf0] sm:$0xff]
      %v1142 = vld [vmem:[#allocation2 + $0xf8] sm:$0xff]
      %v1143 = vpack.c.bf16 %v1049, %v1047
      %v1144 = vpack.c.bf16 %v1050, %v1048
      %v1145 = vpack.c.bf16 %v1053, %v1051
      %v1146 = vpack.c.bf16 %v1054, %v1052
      %v1147 = vpack.c.bf16 %v1057, %v1055
      %v1148 = vpack.c.bf16 %v1058, %v1056
      %v1149 = vpack.c.bf16 %v1061, %v1059
      %v1150 = vpack.c.bf16 %v1062, %v1060
      %v1151 = vpack.c.bf16 %v1065, %v1063
      %v1152 = vpack.c.bf16 %v1066, %v1064
      %v1153 = vpack.c.bf16 %v1069, %v1067
      %v1154 = vpack.c.bf16 %v1070, %v1068
      %v1155 = vpack.c.bf16 %v1073, %v1071
      %v1156 = vpack.c.bf16 %v1074, %v1072
      %v1157 = vpack.c.bf16 %v1077, %v1075
      %v1158 = vpack.c.bf16 %v1078, %v1076
      %v1159 = vpack.c.bf16 %v1081, %v1079
      %v1160 = vpack.c.bf16 %v1082, %v1080
      %v1161 = vpack.c.bf16 %v1085, %v1083
      %v1162 = vpack.c.bf16 %v1086, %v1084
      %v1163 = vpack.c.bf16 %v1089, %v1087
      %v1164 = vpack.c.bf16 %v1090, %v1088
      %v1165 = vpack.c.bf16 %v1093, %v1091
      %v1166 = vpack.c.bf16 %v1094, %v1092
      %v1167 = vpack.c.bf16 %v1097, %v1095
      %v1168 = vpack.c.bf16 %v1098, %v1096
      %v1169 = vpack.c.bf16 %v1101, %v1099
      %v1170 = vpack.c.bf16 %v1102, %v1100
      %v1171 = vpack.c.bf16 %v1105, %v1103
      %v1172 = vpack.c.bf16 %v1106, %v1104
      %v1173 = vpack.c.bf16 %v1109, %v1107
      %v1174 = vpack.c.bf16 %v1110, %v1108
      %v1175 = vld [vmem:[%s344] sm:$0xff]
      %v1176 = vld [vmem:[%s344 + $0x8] sm:$0xff]
      %v1177 = vld [vmem:[%s344 + $0x10] sm:$0xff]
      %v1178 = vld [vmem:[%s344 + $0x18] sm:$0xff]
      %v1179 = vld [vmem:[%s344 + $0x20] sm:$0xff]
      %v1180 = vld [vmem:[%s344 + $0x28] sm:$0xff]
      %v1181 = vld [vmem:[%s344 + $0x30] sm:$0xff]
      %v1182 = vld [vmem:[%s344 + $0x38] sm:$0xff]
      %v1183 = vld [vmem:[%s344 + $0x40] sm:$0xff]
      %v1184 = vld [vmem:[%s344 + $0x48] sm:$0xff]
      %v1185 = vld [vmem:[%s344 + $0x50] sm:$0xff]
      %v1186 = vld [vmem:[%s344 + $0x58] sm:$0xff]
      %v1187 = vld [vmem:[%s344 + $0x60] sm:$0xff]
      %v1188 = vld [vmem:[%s344 + $0x68] sm:$0xff]
      %v1189 = vld [vmem:[%s344 + $0x70] sm:$0xff]
      %v1190 = vld [vmem:[%s344 + $0x78] sm:$0xff]
      %v1191 = vld [vmem:[%s344 + $0x80] sm:$0xff]
      %v1192 = vld [vmem:[%s344 + $0x88] sm:$0xff]
      %v1193 = vld [vmem:[%s344 + $0x90] sm:$0xff]
      %v1194 = vld [vmem:[%s344 + $0x98] sm:$0xff]
      %v1195 = vld [vmem:[%s344 + $0xa0] sm:$0xff]
      %v1196 = vld [vmem:[%s344 + $0xa8] sm:$0xff]
      %v1197 = vld [vmem:[%s344 + $0xb0] sm:$0xff]
      %v1198 = vld [vmem:[%s344 + $0xb8] sm:$0xff]
      %v1199 = vld [vmem:[%s344 + $0xc0] sm:$0xff]
      %v1200 = vld [vmem:[%s344 + $0xc8] sm:$0xff]
      %v1201 = vld [vmem:[%s344 + $0xd0] sm:$0xff]
      %v1202 = vld [vmem:[%s344 + $0xd8] sm:$0xff]
      %v1203 = vld [vmem:[%s344 + $0xe0] sm:$0xff]
      %v1204 = vld [vmem:[%s344 + $0xe8] sm:$0xff]
      %v1205 = vld [vmem:[%s344 + $0xf0] sm:$0xff]
      %v1206 = vld [vmem:[%s344 + $0xf8] sm:$0xff]
      %v1207 = vpack.c.bf16 %v1176, %v1175
      %v1208 = vpack.c.bf16 %v1178, %v1177
      %v1209 = vpack.c.bf16 %v1180, %v1179
      %v1210 = vpack.c.bf16 %v1182, %v1181
      %v1211 = vpack.c.bf16 %v1184, %v1183
      %v1212 = vpack.c.bf16 %v1186, %v1185
      %v1213 = vpack.c.bf16 %v1188, %v1187
      %v1214 = vpack.c.bf16 %v1190, %v1189
      %v1215 = vpack.c.bf16 %v1192, %v1191
      %v1216 = vpack.c.bf16 %v1194, %v1193
      %v1217 = vpack.c.bf16 %v1196, %v1195
      %v1218 = vpack.c.bf16 %v1198, %v1197
      %v1219 = vpack.c.bf16 %v1200, %v1199
      %v1220 = vpack.c.bf16 %v1202, %v1201
      %v1221 = vpack.c.bf16 %v1204, %v1203
      %v1222 = vpack.c.bf16 %v1206, %v1205
      %1223 = vmatprep.subr.bf16.mxu0 0
      %1224 = vmatpush1.bf16.msra.mxu0 %v1214
      %1225 = vmatprep.subr.bf16.mxu0 0
      %1226 = vmatpush1.bf16.msra.mxu0 %v1213
      %1227 = vmatprep.subr.bf16.mxu0 0
      %1228 = vmatpush1.bf16.msra.mxu0 %v1212
      %1229 = vmatprep.subr.bf16.mxu0 0
      %1230 = vmatpush1.bf16.msra.mxu0 %v1211
      %1231 = vmatprep.subr.bf16.mxu0 0
      %1232 = vmatpush1.bf16.msra.mxu0 %v1210
      %1233 = vmatprep.subr.bf16.mxu0 0
      %1234 = vmatpush1.bf16.msra.mxu0 %v1209
      %1235 = vmatprep.subr.bf16.mxu0 0
      %1236 = vmatpush1.bf16.msra.mxu0 %v1208
      %1237 = vmatprep.subr.bf16.mxu0 0
      %1238 = vmatpush1.bf16.msra.mxu0 %v1207
      %1239 = vmatprep.subr.bf16.mxu0 0
      %1240 = vmatpush2.bf16.msra.mxu0 %v1222
      %1241 = vmatprep.subr.bf16.mxu0 0
      %1242 = vmatpush2.bf16.msra.mxu0 %v1221
      %1243 = vmatprep.subr.bf16.mxu0 0
      %1244 = vmatpush2.bf16.msra.mxu0 %v1220
      %1245 = vmatprep.subr.bf16.mxu0 0
      %1246 = vmatpush2.bf16.msra.mxu0 %v1219
      %1247 = vmatprep.subr.bf16.mxu0 0
      %1248 = vmatpush2.bf16.msra.mxu0 %v1218
      %1249 = vmatprep.subr.bf16.mxu0 0
      %1250 = vmatpush2.bf16.msra.mxu0 %v1217
      %1251 = vmatprep.subr.bf16.mxu0 0
      %1252 = vmatpush2.bf16.msra.mxu0 %v1216
      %1253 = vmatprep.subr.bf16.mxu0 0
      %1254 = vmatpush2.bf16.msra.mxu0 %v1215
      %1255 = vmatprep.mubr.bf16.mxu0 %v1144
      %1256 = vmatmul.mubr.bf16.gmra.mxu0 %v1143
      %v1257 = vpop.f32.mrf.mxu0
      %v1258 = vadd.f32 0.0, %v1257
      %v1259 = vpop.f32.mrf.mxu0
      %v1260 = vpop.f32.mrf.mxu0
      %v1261 = vadd.f32 0.0, %v1260
      %v1262 = vpop.f32.mrf.mxu0
      %1263 = vmatprep.mubr.bf16.mxu0 %v1146
      %1264 = vmatmul.mubr.bf16.gmra.mxu0 %v1145
      %v1265 = vpop.f32.mrf.mxu0
      %v1266 = vadd.f32 0.0, %v1265
      %v1267 = vpop.f32.mrf.mxu0
      %v1268 = vpop.f32.mrf.mxu0
      %v1269 = vadd.f32 0.0, %v1268
      %v1270 = vpop.f32.mrf.mxu0
      %1271 = vmatprep.mubr.bf16.mxu0 %v1148
      %1272 = vmatmul.mubr.bf16.gmra.mxu0 %v1147
      %v1273 = vpop.f32.mrf.mxu0
      %v1274 = vadd.f32 0.0, %v1273
      %v1275 = vpop.f32.mrf.mxu0
      %v1276 = vpop.f32.mrf.mxu0
      %v1277 = vadd.f32 0.0, %v1276
      %v1278 = vpop.f32.mrf.mxu0
      %1279 = vmatprep.mubr.bf16.mxu0 %v1150
      %1280 = vmatmul.mubr.bf16.gmra.mxu0 %v1149
      %v1281 = vpop.f32.mrf.mxu0
      %v1282 = vadd.f32 0.0, %v1281
      %v1283 = vpop.f32.mrf.mxu0
      %v1284 = vpop.f32.mrf.mxu0
      %v1285 = vadd.f32 0.0, %v1284
      %v1286 = vpop.f32.mrf.mxu0
      %1287 = vmatprep.mubr.bf16.mxu0 %v1152
      %1288 = vmatmul.mubr.bf16.gmra.mxu0 %v1151
      %v1289 = vpop.f32.mrf.mxu0
      %v1290 = vadd.f32 0.0, %v1289
      %v1291 = vpop.f32.mrf.mxu0
      %v1292 = vpop.f32.mrf.mxu0
      %v1293 = vadd.f32 0.0, %v1292
      %v1294 = vpop.f32.mrf.mxu0
      %1295 = vmatprep.mubr.bf16.mxu0 %v1154
      %1296 = vmatmul.mubr.bf16.gmra.mxu0 %v1153
      %v1297 = vpop.f32.mrf.mxu0
      %v1298 = vadd.f32 0.0, %v1297
      %v1299 = vpop.f32.mrf.mxu0
      %v1300 = vpop.f32.mrf.mxu0
      %v1301 = vadd.f32 0.0, %v1300
      %v1302 = vpop.f32.mrf.mxu0
      %1303 = vmatprep.mubr.bf16.mxu0 %v1156
      %1304 = vmatmul.mubr.bf16.gmra.mxu0 %v1155
      %v1305 = vpop.f32.mrf.mxu0
      %v1306 = vadd.f32 0.0, %v1305
      %v1307 = vpop.f32.mrf.mxu0
      %v1308 = vpop.f32.mrf.mxu0
      %v1309 = vadd.f32 0.0, %v1308
      %v1310 = vpop.f32.mrf.mxu0
      %1311 = vmatprep.mubr.bf16.mxu0 %v1158
      %1312 = vmatmul.mubr.bf16.gmra.mxu0 %v1157
      %v1313 = vpop.f32.mrf.mxu0
      %v1314 = vadd.f32 0.0, %v1313
      %v1315 = vpop.f32.mrf.mxu0
      %v1316 = vpop.f32.mrf.mxu0
      %v1317 = vadd.f32 0.0, %v1316
      %v1318 = vpop.f32.mrf.mxu0
      %1319 = vmatprep.mubr.bf16.mxu0 %v1160
      %1320 = vmatmul.mubr.bf16.gmra.mxu0 %v1159
      %v1321 = vpop.f32.mrf.mxu0
      %v1322 = vadd.f32 0.0, %v1321
      %v1323 = vpop.f32.mrf.mxu0
      %v1324 = vpop.f32.mrf.mxu0
      %v1325 = vadd.f32 0.0, %v1324
      %v1326 = vpop.f32.mrf.mxu0
      %1327 = vmatprep.mubr.bf16.mxu0 %v1162
      %1328 = vmatmul.mubr.bf16.gmra.mxu0 %v1161
      %v1329 = vpop.f32.mrf.mxu0
      %v1330 = vadd.f32 0.0, %v1329
      %v1331 = vpop.f32.mrf.mxu0
      %v1332 = vpop.f32.mrf.mxu0
      %v1333 = vadd.f32 0.0, %v1332
      %v1334 = vpop.f32.mrf.mxu0
      %1335 = vmatprep.mubr.bf16.mxu0 %v1164
      %1336 = vmatmul.mubr.bf16.gmra.mxu0 %v1163
      %v1337 = vpop.f32.mrf.mxu0
      %v1338 = vadd.f32 0.0, %v1337
      %v1339 = vpop.f32.mrf.mxu0
      %v1340 = vpop.f32.mrf.mxu0
      %v1341 = vadd.f32 0.0, %v1340
      %v1342 = vpop.f32.mrf.mxu0
      %1343 = vmatprep.mubr.bf16.mxu0 %v1166
      %1344 = vmatmul.mubr.bf16.gmra.mxu0 %v1165
      %v1345 = vpop.f32.mrf.mxu0
      %v1346 = vadd.f32 0.0, %v1345
      %v1347 = vpop.f32.mrf.mxu0
      %v1348 = vpop.f32.mrf.mxu0
      %v1349 = vadd.f32 0.0, %v1348
      %v1350 = vpop.f32.mrf.mxu0
      %1351 = vmatprep.mubr.bf16.mxu0 %v1168
      %1352 = vmatmul.mubr.bf16.gmra.mxu0 %v1167
      %v1353 = vpop.f32.mrf.mxu0
      %v1354 = vadd.f32 0.0, %v1353
      %v1355 = vpop.f32.mrf.mxu0
      %v1356 = vpop.f32.mrf.mxu0
      %v1357 = vadd.f32 0.0, %v1356
      %v1358 = vpop.f32.mrf.mxu0
      %1359 = vmatprep.mubr.bf16.mxu0 %v1170
      %1360 = vmatmul.mubr.bf16.gmra.mxu0 %v1169
      %v1361 = vpop.f32.mrf.mxu0
      %v1362 = vadd.f32 0.0, %v1361
      %v1363 = vpop.f32.mrf.mxu0
      %v1364 = vpop.f32.mrf.mxu0
      %v1365 = vadd.f32 0.0, %v1364
      %v1366 = vpop.f32.mrf.mxu0
      %1367 = vmatprep.mubr.bf16.mxu0 %v1172
      %1368 = vmatmul.mubr.bf16.gmra.mxu0 %v1171
      %v1369 = vpop.f32.mrf.mxu0
      %v1370 = vadd.f32 0.0, %v1369
      %v1371 = vpop.f32.mrf.mxu0
      %v1372 = vpop.f32.mrf.mxu0
      %v1373 = vadd.f32 0.0, %v1372
      %v1374 = vpop.f32.mrf.mxu0
      %1375 = vmatprep.mubr.bf16.mxu0 %v1174
      %1376 = vmatmul.mubr.bf16.gmra.mxu0 %v1173
      %v1377 = vpop.f32.mrf.mxu0
      %v1378 = vadd.f32 0.0, %v1377
      %v1379 = vpop.f32.mrf.mxu0
      %v1380 = vpop.f32.mrf.mxu0
      %v1381 = vadd.f32 0.0, %v1380
      %v1382 = vpop.f32.mrf.mxu0
      %1383 = vdwg.mxu0
      %v1384 = vadd.f32 %v1111, %v1258
      %v1385 = vadd.f32 %v1112, %v1261
      %v1386 = vadd.f32 %v1113, %v1266
      %v1387 = vadd.f32 %v1114, %v1269
      %v1388 = vadd.f32 %v1115, %v1274
      %v1389 = vadd.f32 %v1116, %v1277
      %v1390 = vadd.f32 %v1117, %v1282
      %v1391 = vadd.f32 %v1118, %v1285
      %v1392 = vadd.f32 %v1119, %v1290
      %v1393 = vadd.f32 %v1120, %v1293
      %v1394 = vadd.f32 %v1121, %v1298
      %v1395 = vadd.f32 %v1122, %v1301
      %v1396 = vadd.f32 %v1123, %v1306
      %v1397 = vadd.f32 %v1124, %v1309
      %v1398 = vadd.f32 %v1125, %v1314
      %v1399 = vadd.f32 %v1126, %v1317
      %v1400 = vadd.f32 %v1127, %v1322
      %v1401 = vadd.f32 %v1128, %v1325
      %v1402 = vadd.f32 %v1129, %v1330
      %v1403 = vadd.f32 %v1130, %v1333
      %v1404 = vadd.f32 %v1131, %v1338
      %v1405 = vadd.f32 %v1132, %v1341
      %v1406 = vadd.f32 %v1133, %v1346
      %v1407 = vadd.f32 %v1134, %v1349
      %v1408 = vadd.f32 %v1135, %v1354
      %v1409 = vadd.f32 %v1136, %v1357
      %v1410 = vadd.f32 %v1137, %v1362
      %v1411 = vadd.f32 %v1138, %v1365
      %v1412 = vadd.f32 %v1139, %v1370
      %v1413 = vadd.f32 %v1140, %v1373
      %v1414 = vadd.f32 %v1141, %v1378
      %v1415 = vadd.f32 %v1142, %v1381
      %1416 = vst.msk [vmem:[#allocation2] sm:$0xff] %vm456, %v1384
      %1417 = vst.msk [vmem:[#allocation2 + $0x8] sm:$0xff] %vm456, %v1385
      %1418 = vst.msk [vmem:[#allocation2 + $0x10] sm:$0xff] %vm456, %v1386
      %1419 = vst.msk [vmem:[#allocation2 + $0x18] sm:$0xff] %vm456, %v1387
      %1420 = vst.msk [vmem:[#allocation2 + $0x20] sm:$0xff] %vm456, %v1388
      %1421 = vst.msk [vmem:[#allocation2 + $0x28] sm:$0xff] %vm456, %v1389
      %1422 = vst.msk [vmem:[#allocation2 + $0x30] sm:$0xff] %vm456, %v1390
      %1423 = vst.msk [vmem:[#allocation2 + $0x38] sm:$0xff] %vm456, %v1391
      %1424 = vst.msk [vmem:[#allocation2 + $0x40] sm:$0xff] %vm456, %v1392
      %1425 = vst.msk [vmem:[#allocation2 + $0x48] sm:$0xff] %vm456, %v1393
      %1426 = vst.msk [vmem:[#allocation2 + $0x50] sm:$0xff] %vm456, %v1394
      %1427 = vst.msk [vmem:[#allocation2 + $0x58] sm:$0xff] %vm456, %v1395
      %1428 = vst.msk [vmem:[#allocation2 + $0x60] sm:$0xff] %vm456, %v1396
      %1429 = vst.msk [vmem:[#allocation2 + $0x68] sm:$0xff] %vm456, %v1397
      %1430 = vst.msk [vmem:[#allocation2 + $0x70] sm:$0xff] %vm456, %v1398
      %1431 = vst.msk [vmem:[#allocation2 + $0x78] sm:$0xff] %vm456, %v1399
      %1432 = vst.msk [vmem:[#allocation2 + $0x80] sm:$0xff] %vm456, %v1400
      %1433 = vst.msk [vmem:[#allocation2 + $0x88] sm:$0xff] %vm456, %v1401
      %1434 = vst.msk [vmem:[#allocation2 + $0x90] sm:$0xff] %vm456, %v1402
      %1435 = vst.msk [vmem:[#allocation2 + $0x98] sm:$0xff] %vm456, %v1403
      %1436 = vst.msk [vmem:[#allocation2 + $0xa0] sm:$0xff] %vm456, %v1404
      %1437 = vst.msk [vmem:[#allocation2 + $0xa8] sm:$0xff] %vm456, %v1405
      %1438 = vst.msk [vmem:[#allocation2 + $0xb0] sm:$0xff] %vm456, %v1406
      %1439 = vst.msk [vmem:[#allocation2 + $0xb8] sm:$0xff] %vm456, %v1407
      %1440 = vst.msk [vmem:[#allocation2 + $0xc0] sm:$0xff] %vm456, %v1408
      %1441 = vst.msk [vmem:[#allocation2 + $0xc8] sm:$0xff] %vm456, %v1409
      %1442 = vst.msk [vmem:[#allocation2 + $0xd0] sm:$0xff] %vm456, %v1410
      %1443 = vst.msk [vmem:[#allocation2 + $0xd8] sm:$0xff] %vm456, %v1411
      %1444 = vst.msk [vmem:[#allocation2 + $0xe0] sm:$0xff] %vm456, %v1412
      %1445 = vst.msk [vmem:[#allocation2 + $0xe8] sm:$0xff] %vm456, %v1413
      %1446 = vst.msk [vmem:[#allocation2 + $0xf0] sm:$0xff] %vm456, %v1414
      %1447 = vst.msk [vmem:[#allocation2 + $0xf8] sm:$0xff] %vm456, %v1415
      // Predicated region
      $region49: #{non_local_block.3} parent=43 // pred_check
        %p1448 = pneg %p357
      $region50: #{non_local_block.3} parent=43 // pred_check_branch
        %1450 = sbr.rel (%p1448) target = $region52
      $region51: #{non_local_block.3} parent=43 // pred_region
        %v1451 = vld [vmem:[#allocation2] sm:$0xff]
        %v1452 = vld [vmem:[#allocation2 + $0x8] sm:$0xff]
        %v1453 = vld [vmem:[#allocation2 + $0x10] sm:$0xff]
        %v1454 = vld [vmem:[#allocation2 + $0x18] sm:$0xff]
        %v1455 = vld [vmem:[#allocation2 + $0x20] sm:$0xff]
        %v1456 = vld [vmem:[#allocation2 + $0x28] sm:$0xff]
        %v1457 = vld [vmem:[#allocation2 + $0x30] sm:$0xff]
        %v1458 = vld [vmem:[#allocation2 + $0x38] sm:$0xff]
        %v1459 = vld [vmem:[#allocation2 + $0x40] sm:$0xff]
        %v1460 = vld [vmem:[#allocation2 + $0x48] sm:$0xff]
        %v1461 = vld [vmem:[#allocation2 + $0x50] sm:$0xff]
        %v1462 = vld [vmem:[#allocation2 + $0x58] sm:$0xff]
        %v1463 = vld [vmem:[#allocation2 + $0x60] sm:$0xff]
        %v1464 = vld [vmem:[#allocation2 + $0x68] sm:$0xff]
        %v1465 = vld [vmem:[#allocation2 + $0x70] sm:$0xff]
        %v1466 = vld [vmem:[#allocation2 + $0x78] sm:$0xff]
        %v1467 = vld [vmem:[#allocation2 + $0x80] sm:$0xff]
        %v1468 = vld [vmem:[#allocation2 + $0x88] sm:$0xff]
        %v1469 = vld [vmem:[#allocation2 + $0x90] sm:$0xff]
        %v1470 = vld [vmem:[#allocation2 + $0x98] sm:$0xff]
        %v1471 = vld [vmem:[#allocation2 + $0xa0] sm:$0xff]
        %v1472 = vld [vmem:[#allocation2 + $0xa8] sm:$0xff]
        %v1473 = vld [vmem:[#allocation2 + $0xb0] sm:$0xff]
        %v1474 = vld [vmem:[#allocation2 + $0xb8] sm:$0xff]
        %v1475 = vld [vmem:[#allocation2 + $0xc0] sm:$0xff]
        %v1476 = vld [vmem:[#allocation2 + $0xc8] sm:$0xff]
        %v1477 = vld [vmem:[#allocation2 + $0xd0] sm:$0xff]
        %v1478 = vld [vmem:[#allocation2 + $0xd8] sm:$0xff]
        %v1479 = vld [vmem:[#allocation2 + $0xe0] sm:$0xff]
        %v1480 = vld [vmem:[#allocation2 + $0xe8] sm:$0xff]
        %v1481 = vld [vmem:[#allocation2 + $0xf0] sm:$0xff]
        %v1482 = vld [vmem:[#allocation2 + $0xf8] sm:$0xff]
        %v1483 = vld [vmem:[%s4] sm:$0xf]
        %v1485 = vsel %vm456, %v1483, 0
        %v1488 = vsel %vm456, %v1451, 0
        %v1491 = vsel %vm456, %v1452, 0
        %v1494 = vsel %vm456, %v1453, 0
        %v1497 = vsel %vm456, %v1454, 0
        %v1500 = vsel %vm456, %v1455, 0
        %v1503 = vsel %vm456, %v1456, 0
        %v1506 = vsel %vm456, %v1457, 0
        %v1509 = vsel %vm456, %v1458, 0
        %v1512 = vsel %vm456, %v1459, 0
        %v1515 = vsel %vm456, %v1460, 0
        %v1518 = vsel %vm456, %v1461, 0
        %v1521 = vsel %vm456, %v1462, 0
        %v1524 = vsel %vm456, %v1463, 0
        %v1527 = vsel %vm456, %v1464, 0
        %v1530 = vsel %vm456, %v1465, 0
        %v1533 = vsel %vm456, %v1466, 0
        %v1536 = vsel %vm456, %v1467, 0
        %v1539 = vsel %vm456, %v1468, 0
        %v1542 = vsel %vm456, %v1469, 0
        %v1545 = vsel %vm456, %v1470, 0
        %v1548 = vsel %vm456, %v1471, 0
        %v1551 = vsel %vm456, %v1472, 0
        %v1554 = vsel %vm456, %v1473, 0
        %v1557 = vsel %vm456, %v1474, 0
        %v1560 = vsel %vm456, %v1475, 0
        %v1563 = vsel %vm456, %v1476, 0
        %v1566 = vsel %vm456, %v1477, 0
        %v1569 = vsel %vm456, %v1478, 0
        %v1572 = vsel %vm456, %v1479, 0
        %v1575 = vsel %vm456, %v1480, 0
        %v1578 = vsel %vm456, %v1481, 0
        %v1581 = vsel %vm456, %v1482, 0
        %1583 = vmatprep.subr.mxu0 0.0
        %1584 = vmatpush1.xpose.msra.mxu0 %v1533
        %1585 = vmatprep.subr.mxu0 0.0
        %1586 = vmatpush1.xpose.msra.mxu0 %v1530
        %1587 = vmatprep.subr.mxu0 0.0
        %1588 = vmatpush1.xpose.msra.mxu0 %v1527
        %1589 = vmatprep.subr.mxu0 0.0
        %1590 = vmatpush1.xpose.msra.mxu0 %v1524
        %1591 = vmatprep.subr.mxu0 0.0
        %1592 = vmatpush1.xpose.msra.mxu0 %v1521
        %1593 = vmatprep.subr.mxu0 0.0
        %1594 = vmatpush1.xpose.msra.mxu0 %v1518
        %1595 = vmatprep.subr.mxu0 0.0
        %1596 = vmatpush1.xpose.msra.mxu0 %v1515
        %1597 = vmatprep.subr.mxu0 0.0
        %1598 = vmatpush1.xpose.msra.mxu0 %v1512
        %1599 = vmatprep.subr.mxu0 0.0
        %1600 = vmatpush1.xpose.msra.mxu0 %v1509
        %1601 = vmatprep.subr.mxu0 0.0
        %1602 = vmatpush1.xpose.msra.mxu0 %v1506
        %1603 = vmatprep.subr.mxu0 0.0
        %1604 = vmatpush1.xpose.msra.mxu0 %v1503
        %1605 = vmatprep.subr.mxu0 0.0
        %1606 = vmatpush1.xpose.msra.mxu0 %v1500
        %1607 = vmatprep.subr.mxu0 0.0
        %1608 = vmatpush1.xpose.msra.mxu0 %v1497
        %1609 = vmatprep.subr.mxu0 0.0
        %1610 = vmatpush1.xpose.msra.mxu0 %v1494
        %1611 = vmatprep.subr.mxu0 0.0
        %1612 = vmatpush1.xpose.msra.mxu0 %v1491
        %1613 = vmatprep.subr.mxu0 0.0
        %1614 = vmatpush1.xpose.msra.mxu0 %v1488
        %1615 = vmatprep.subr.mxu0 0.0
        %1616 = vmatpush2.xpose.msra.mxu0 %v1581
        %1617 = vmatprep.subr.mxu0 0.0
        %1618 = vmatpush2.xpose.msra.mxu0 %v1578
        %1619 = vmatprep.subr.mxu0 0.0
        %1620 = vmatpush2.xpose.msra.mxu0 %v1575
        %1621 = vmatprep.subr.mxu0 0.0
        %1622 = vmatpush2.xpose.msra.mxu0 %v1572
        %1623 = vmatprep.subr.mxu0 0.0
        %1624 = vmatpush2.xpose.msra.mxu0 %v1569
        %1625 = vmatprep.subr.mxu0 0.0
        %1626 = vmatpush2.xpose.msra.mxu0 %v1566
        %1627 = vmatprep.subr.mxu0 0.0
        %1628 = vmatpush2.xpose.msra.mxu0 %v1563
        %1629 = vmatprep.subr.mxu0 0.0
        %1630 = vmatpush2.xpose.msra.mxu0 %v1560
        %1631 = vmatprep.subr.mxu0 0.0
        %1632 = vmatpush2.xpose.msra.mxu0 %v1557
        %1633 = vmatprep.subr.mxu0 0.0
        %1634 = vmatpush2.xpose.msra.mxu0 %v1554
        %1635 = vmatprep.subr.mxu0 0.0
        %1636 = vmatpush2.xpose.msra.mxu0 %v1551
        %1637 = vmatprep.subr.mxu0 0.0
        %1638 = vmatpush2.xpose.msra.mxu0 %v1548
        %1639 = vmatprep.subr.mxu0 0.0
        %1640 = vmatpush2.xpose.msra.mxu0 %v1545
        %1641 = vmatprep.subr.mxu0 0.0
        %1642 = vmatpush2.xpose.msra.mxu0 %v1542
        %1643 = vmatprep.subr.mxu0 0.0
        %1644 = vmatpush2.xpose.msra.mxu0 %v1539
        %1645 = vmatprep.subr.mxu0 0.0
        %1646 = vmatpush2.xpose.msra.mxu0 %v1536
        %1647 = vmatprep.mubr.f32.mxu0 0.0
        %1648 = vmatmul.mubr.f32.gmra.mxu0 %v1485
        %v1649 = vpop.f32.mrf.mxu0
        %v1650 = vadd.f32 0.0, %v1649
        %v1651 = vpop.f32.mrf.mxu0
        %v1652 = vadd.f32 0.0, %v1651
        %1653 = vdwg.mxu0
        %v1654 = vld [vmem:[%s350] sm:$0xff]
        %v1657 = vcombine.low %v1650, %v1652
        %v1659 = vadd.f32 %v1654, %v1657
        %v1660 = vld [vmem:[%s5] sm:$0xf]
        %1662 = vset.pattern.permute.xlu0 0
        %1663 = vperm.xlu0 %1662, %v1660
        %v1664 = vpop.permute.xlu0 %1663
        %v1666 = vunpack.c.l.s4 839922192
        %v1667 = vunpack.c.0.s8 %v1666
        %v1668 = vlaneseq
        %v1669 = vshrl.u32 %v1668, 7
        %v1670 = vsub.s32 %v1667, %v1669
        %v1671 = vrot.slane %v1664, %v1670
        %v1673 = vadd.f32 %v1659, %v1671
        %1674 = vst [vmem:[%s355] sm:$0xff] %v1673
      $region52: #{non_local_block.3} parent=43 // pred_fallthru
        _
      %p1675 = scmp.lt.s32.totalorder %s21, 1
      %s1676 = scalar_select %p1675, %s21, 1
      %s1677 = smul.addr %s1676, 2
      %s1678 = smul.addr %s1677, 4
      %s1679 = scalar_lea.vmem %s6, %s1678
      // Predicated region
      $region53: #{non_local_block.3} parent=43 // pred_check
        %p1680 = pneg %p197
      $region54: #{non_local_block.3} parent=43 // pred_check_branch
        %1682 = sbr.rel (%p1680) target = $region56
      $region55: #{non_local_block.3} parent=43 // pred_region
        _
      $region56: #{non_local_block.3} parent=43 // pred_fallthru
        _
    $region44: #{non_local_block.3} parent=5 // pred_fallthru
      _
    %p1683 = scmp.le.s32.totalorder 2, %s12
    // Predicated region
    $region57: #{non_local_block.3} parent=5 // pred_check
      %p1684 = pneg %p1683
    $region58: #{non_local_block.3} parent=5 // pred_check_branch
      %1686 = sbr.rel (%p1684) target = $region60
    $region59: #{non_local_block.3} parent=5 // pred_region
      %s1687 = ssub.s32 %s12, 2
      // Predicated region
      $region61: #{non_local_block.3} parent=59 // pred_check
        %p1688 = pneg %p203
      $region62: #{non_local_block.3} parent=59 // pred_check_branch
        %1690 = sbr.rel (%p1688) target = $region64
      $region63: #{non_local_block.3} parent=59 // pred_region
        %p1691 = scmp.lt.s32.totalorder %s23, 1
        %s1692 = scalar_select %p1691, %s23, 1
        %s1693 = smul.addr %s1692, 2
        %s1694 = smul.addr %s1693, 4
        %s1695 = scalar_lea.vmem %s6, %s1694
      $region64: #{non_local_block.3} parent=59 // pred_fallthru
        _
    $region60: #{non_local_block.3} parent=5 // pred_fallthru
      _
  $region6: #{non_local_block.3} parent=0 // loop_footer
    %s16 = sadd.s32 1, %s12
  $region7: #{non_local_block.3} parent=0 // loop_footer_branch
    %11 = sbr.rel target = $region3
  $region8: #{non_local_block.3} parent=0 // loop_exit
    _

</llo_original>
